<compile_context>
chip_gen: v6e
topology: v6e:2x2x1
jax: 0.10.0
libtpu: 0.0.40
codegen_flags: <defaults>
</compile_context>

<pallas_src>
import numpy as np
import jax
import jax.numpy as jnp
from jax.experimental import pallas as pl
from jax.experimental.pallas import tpu as pltpu


VMEM_LIMIT_BYTES = 32 * 1024 * 1024


def _cparams(sem):
    return pltpu.CompilerParams(dimension_semantics=sem,
                                vmem_limit_bytes=VMEM_LIMIT_BYTES)


# ----------------------------------------------------------------------------
# small helpers
# ----------------------------------------------------------------------------

def _round_up(x, m):
    return (x + m - 1) // m * m


def _pad_ch(x, c):
    if x.shape[-1] == c:
        return x
    pads = [(0, 0)] * (x.ndim - 1) + [(0, c - x.shape[-1])]
    return jnp.pad(x, pads)


def _unfold_nhwc(x, k, pad):
    """NHWC unfold; only used for the tiny 4-channel 7x7 flow conv."""
    BN, H, W, C = x.shape
    xp = jnp.pad(x, ((0, 0), (pad, pad), (pad, pad), (0, 0)))
    cols = [xp[:, i:i + H, j:j + W, :] for i in range(k) for j in range(k)]
    return jnp.concatenate(cols, axis=-1)


def _softplus(x):
    return jnp.maximum(x, 0.0) + jnp.log1p(jnp.exp(-jnp.abs(x)))


# ----------------------------------------------------------------------------
# flat shifted-matmul conv machinery (all in-kernel, padded VMEM scratches)
# ----------------------------------------------------------------------------

def _geom(H, W, pad):
    """Flat padded-image geometry.  Wp is rounded up to 8 so the final
    (H*Wp, C) -> (H, Wp, C) reshape stays sublane-tile aligned."""
    Wp = _round_up(W + 2 * pad, 8)
    HWp = H * Wp
    rows = (H + 2 * pad + 1) * Wp
    off = pad * Wp + pad
    return Wp, HWp, rows, off


def _zero_fill(ref):
    ref[...] = jnp.zeros_like(ref)


def _fill_rows_ref(pad_ref, x_ref, H, W, Wp, off):
    """Copy the (H, W, C) block of an input ref into the interior of a zeroed
    flat (rows, C) padded scratch."""
    for i in range(H):
        pad_ref[pl.ds(off + i * Wp, W), :] = x_ref[0, i]


def _fill_rows_val(pad_ref, val, H, W, Wp, off):
    for i in range(H):
        pad_ref[pl.ds(off + i * Wp, W), :] = val[i]


def _conv_from_pads(pad_refs, cgs, w_ref, b_ref, ksize, Wp, HWp):
    """'same' conv: per tap a contiguous row-offset slice of the flat padded
    scratch(es) is matmul'd with the corresponding weight rows."""
    cin_total = sum(cgs)
    nout = w_ref.shape[1]
    acc = jnp.zeros((HWp, nout), jnp.float32)
    for di in range(ksize):
        for dj in range(ksize):
            base = (di * ksize + dj) * cin_total
            start = di * Wp + dj
            o = 0
            for g, cg in enumerate(cgs):
                xs = pad_refs[g][pl.ds(start, HWp), :]
                ws = w_ref[pl.ds(base + o, cg), :]
                acc = acc + jnp.dot(xs, ws, preferred_element_type=jnp.float32)
                o += cg
    return acc + b_ref[...]


def _crop(acc_flat, H, W, Wp):
    nout = acc_flat.shape[-1]
    return acc_flat.reshape(H, Wp, nout)[:, :W, :]


# ----------------------------------------------------------------------------
# fused encoder kernel: 1x1 conv -> relu -> (pad in VMEM) -> 3x3 conv -> relu
# used for both the correlation encoder and the (unfolded) flow encoder
# ----------------------------------------------------------------------------

def _make_encoder_kernel(H, W, cin, cmid):
    pad = 1
    Wp, HWp, rows, off = _geom(H, W, pad)

    def kernel(x_ref, w1_ref, b1_ref, w2_ref, b2_ref, o_ref, mid_ref):
        x = x_ref[0].reshape(H * W, cin)
        c1 = jnp.dot(x, w1_ref[...], preferred_element_type=jnp.float32)
        c1 = jnp.maximum(c1 + b1_ref[...], 0.0)
        c1 = c1.reshape(H, W, cmid).astype(jnp.bfloat16)
        _zero_fill(mid_ref)
        _fill_rows_val(mid_ref, c1, H, W, Wp, off)
        r2 = _conv_from_pads([mid_ref], (cmid,), w2_ref, b2_ref, 3, Wp, HWp)
        o_ref[0] = jnp.maximum(_crop(r2, H, W, Wp), 0.0).astype(o_ref.dtype)

    return kernel, rows


def encoder_fused(x, p1, p2):
    w1, b1 = p1
    w2, b2 = p2
    BN, H, W, cin = x.shape
    cmid = w1.shape[1]
    cout = w2.shape[1]
    assert w1.shape[0] == cin and w2.shape[0] == 9 * cmid
    kern, rows = _make_encoder_kernel(H, W, cin, cmid)
    return pl.pallas_call(
        kern,
        out_shape=jax.ShapeDtypeStruct((BN, H, W, cout), jnp.bfloat16),
        grid=(BN,),
        in_specs=[
            pl.BlockSpec((1, H, W, cin), lambda b: (b, 0, 0, 0)),
            pl.BlockSpec(w1.shape, lambda b: (0, 0)),
            pl.BlockSpec(b1.shape, lambda b: (0, 0)),
            pl.BlockSpec(w2.shape, lambda b: (0, 0)),
            pl.BlockSpec(b2.shape, lambda b: (0, 0)),
        ],
        out_specs=pl.BlockSpec((1, H, W, cout), lambda b: (b, 0, 0, 0)),
        scratch_shapes=[pltpu.VMEM((rows, cmid), jnp.bfloat16)],
        compiler_params=_cparams(("parallel",)),
    )(x, w1, b1, w2, b2)


# ----------------------------------------------------------------------------
# fused ConvGRU kernel: convz|convr -> gates -> r*h (padded in VMEM) -> convq
# -> h' = (1-z)*h + z*tanh(q).  inp|corr|flow are packed to a K=384 group.
# ----------------------------------------------------------------------------

def _make_gru_kernel(H, W):
    pad = 1
    Wp, HWp, rows, off = _geom(H, W, pad)

    def kernel(net_ref, inp_ref, c_ref, f_ref, wzr_ref, bzr_ref, wq_ref,
               bq_ref, o_ref, net_pad, cxf_pad, rh_pad):
        _zero_fill(net_pad)
        _zero_fill(cxf_pad)
        _zero_fill(rh_pad)
        for i in range(H):
            s = off + i * Wp
            net_pad[pl.ds(s, W), :] = net_ref[0, i]
            cxf_pad[pl.ds(s, W), 0:128] = inp_ref[0, i]
            cxf_pad[pl.ds(s, W), 128:256] = c_ref[0, i]
            cxf_pad[pl.ds(s, W), 256:384] = f_ref[0, i]

        zr = _conv_from_pads([net_pad, cxf_pad], (128, 384),
                             wzr_ref, bzr_ref, 3, Wp, HWp)
        zr = _crop(zr, H, W, Wp)                        # (H, W, 256) f32
        z = jax.nn.sigmoid(zr[:, :, 0:128])
        r = jax.nn.sigmoid(zr[:, :, 128:256])
        h = net_ref[0].astype(jnp.float32)
        rh = (r * h).astype(jnp.bfloat16)
        _fill_rows_val(rh_pad, rh, H, W, Wp, off)

        q = _conv_from_pads([rh_pad, cxf_pad], (128, 384),
                            wq_ref, bq_ref, 3, Wp, HWp)
        q = jnp.tanh(_crop(q, H, W, Wp))
        o_ref[0] = ((1.0 - z) * h + z * q).astype(o_ref.dtype)

    return kernel, rows


def gru_fused(net_h, inp_h, c, f, p_zr, p_q):
    wzr, bzr = p_zr
    wq, bq = p_q
    BN, H, W, _ = net_h.shape
    kern, rows = _make_gru_kernel(H, W)
    return pl.pallas_call(
        kern,
        out_shape=jax.ShapeDtypeStruct((BN, H, W, 128), jnp.bfloat16),
        grid=(BN,),
        in_specs=[
            pl.BlockSpec((1, H, W, 128), lambda b: (b, 0, 0, 0)),
            pl.BlockSpec((1, H, W, 128), lambda b: (b, 0, 0, 0)),
            pl.BlockSpec((1, H, W, 128), lambda b: (b, 0, 0, 0)),
            pl.BlockSpec((1, H, W, 128), lambda b: (b, 0, 0, 0)),
            pl.BlockSpec(wzr.shape, lambda b: (0, 0)),
            pl.BlockSpec(bzr.shape, lambda b: (0, 0)),
            pl.BlockSpec(wq.shape, lambda b: (0, 0)),
            pl.BlockSpec(bq.shape, lambda b: (0, 0)),
        ],
        out_specs=pl.BlockSpec((1, H, W, 128), lambda b: (b, 0, 0, 0)),
        scratch_shapes=[pltpu.VMEM((rows, 128), jnp.bfloat16),
                        pltpu.VMEM((rows, 384), jnp.bfloat16),
                        pltpu.VMEM((rows, 128), jnp.bfloat16)],
        compiler_params=_cparams(("parallel",)),
    )(net_h, inp_h, c, f, wzr, bzr, wq, bq)


# ----------------------------------------------------------------------------
# fused delta/weight head (+ GraphAgg conv1) kernel
# ----------------------------------------------------------------------------

def _make_head_agg_kernel(H, W):
    pad = 1
    Wp, HWp, rows, off = _geom(H, W, pad)

    def kernel(net_ref, wdw_ref, bdw_ref, wh_ref, bh_ref, wa_ref, ba_ref,
               head_ref, agg_ref, net_pad, mid_pad):
        _zero_fill(net_pad)
        _fill_rows_ref(net_pad, net_ref, H, W, Wp, off)

        dw1 = _conv_from_pads([net_pad], (128,), wdw_ref, bdw_ref, 3, Wp, HWp)
        dw1 = jnp.maximum(_crop(dw1, H, W, Wp), 0.0).astype(jnp.bfloat16)
        _zero_fill(mid_pad)
        _fill_rows_val(mid_pad, dw1, H, W, Wp, off)

        hd = _conv_from_pads([mid_pad], (256,), wh_ref, bh_ref, 3, Wp, HWp)
        hd = _crop(hd, H, W, Wp)
        lane = jax.lax.broadcasted_iota(jnp.int32, hd.shape, 2)
        head_ref[0] = jnp.where(lane < 2, hd,
                                jax.nn.sigmoid(hd)).astype(head_ref.dtype)

        a1 = _conv_from_pads([net_pad], (128,), wa_ref, ba_ref, 3, Wp, HWp)
        agg_ref[0] = jnp.maximum(_crop(a1, H, W, Wp), 0.0).astype(agg_ref.dtype)

    return kernel, rows


def head_agg_fused(net_new, p_dw1, p_head, p_agg1):
    wd, bd = p_dw1
    wh, bh = p_head
    wa, ba = p_agg1
    BN, H, W, _ = net_new.shape
    kern, rows = _make_head_agg_kernel(H, W)
    return pl.pallas_call(
        kern,
        out_shape=(jax.ShapeDtypeStruct((BN, H, W, 128), jnp.bfloat16),
                   jax.ShapeDtypeStruct((BN, H, W, 128), jnp.bfloat16)),
        grid=(BN,),
        in_specs=[
            pl.BlockSpec((1, H, W, 128), lambda b: (b, 0, 0, 0)),
            pl.BlockSpec(wd.shape, lambda b: (0, 0)),
            pl.BlockSpec(bd.shape, lambda b: (0, 0)),
            pl.BlockSpec(wh.shape, lambda b: (0, 0)),
            pl.BlockSpec(bh.shape, lambda b: (0, 0)),
            pl.BlockSpec(wa.shape, lambda b: (0, 0)),
            pl.BlockSpec(ba.shape, lambda b: (0, 0)),
        ],
        out_specs=(pl.BlockSpec((1, H, W, 128), lambda b: (b, 0, 0, 0)),
                   pl.BlockSpec((1, H, W, 128), lambda b: (b, 0, 0, 0))),
        scratch_shapes=[pltpu.VMEM((rows, 128), jnp.bfloat16),
                        pltpu.VMEM((rows, 256), jnp.bfloat16)],
        compiler_params=_cparams(("parallel",)),
    )(net_new, wd, bd, wh, bh, wa, ba)


# ----------------------------------------------------------------------------
# fused GraphAgg tail kernel: conv2 -> relu -> {eta (3x3, softplus*0.01),
# upmask (1x1)}
# ----------------------------------------------------------------------------

def _make_agg_tail_kernel(H, W):
    pad = 1
    Wp, HWp, rows, off = _geom(H, W, pad)

    def kernel(x_ref, wc2_ref, bc2_ref, we_ref, be_ref, wu_ref, bu_ref,
               eta_ref, up_ref, x_pad, n2_pad):
        _zero_fill(x_pad)
        _fill_rows_ref(x_pad, x_ref, H, W, Wp, off)

        n2 = _conv_from_pads([x_pad], (128,), wc2_ref, bc2_ref, 3, Wp, HWp)
        n2 = jnp.maximum(_crop(n2, H, W, Wp), 0.0)
        n2b = n2.astype(jnp.bfloat16)
        _zero_fill(n2_pad)
        _fill_rows_val(n2_pad, n2b, H, W, Wp, off)

        e = _conv_from_pads([n2_pad], (128,), we_ref, be_ref, 3, Wp, HWp)
        e = _crop(e, H, W, Wp)
        eta_ref[0] = (0.01 * _softplus(e)).astype(eta_ref.dtype)

        um = jnp.dot(n2b.reshape(H * W, 128), wu_ref[...],
                     preferred_element_type=jnp.float32) + bu_ref[...]
        up_ref[0] = um.reshape(H, W, um.shape[-1]).astype(up_ref.dtype)

    return kernel, rows


def agg_tail_fused(agg_g, p_c2, p_eta, p_up):
    wc, bc = p_c2
    we, be = p_eta
    wu, bu = p_up
    GB, H, W, _ = agg_g.shape
    nup = wu.shape[1]
    kern, rows = _make_agg_tail_kernel(H, W)
    return pl.pallas_call(
        kern,
        out_shape=(jax.ShapeDtypeStruct((GB, H, W, 128), jnp.float32),
                   jax.ShapeDtypeStruct((GB, H, W, nup), jnp.float32)),
        grid=(GB,),
        in_specs=[
            pl.BlockSpec((1, H, W, 128), lambda b: (b, 0, 0, 0)),
            pl.BlockSpec(wc.shape, lambda b: (0, 0)),
            pl.BlockSpec(bc.shape, lambda b: (0, 0)),
            pl.BlockSpec(we.shape, lambda b: (0, 0)),
            pl.BlockSpec(be.shape, lambda b: (0, 0)),
            pl.BlockSpec(wu.shape, lambda b: (0, 0)),
            pl.BlockSpec(bu.shape, lambda b: (0, 0)),
        ],
        out_specs=(pl.BlockSpec((1, H, W, 128), lambda b: (b, 0, 0, 0)),
                   pl.BlockSpec((1, H, W, nup), lambda b: (b, 0, 0, 0))),
        scratch_shapes=[pltpu.VMEM((rows, 128), jnp.bfloat16),
                        pltpu.VMEM((rows, 128), jnp.bfloat16)],
        compiler_params=_cparams(("parallel",)),
    )(agg_g, wc, bc, we, be, wu, bu)


# ----------------------------------------------------------------------------
# single-pass scatter_mean over edges (spatial-tile parallel axis +
# reciprocal-count multiply)
# ----------------------------------------------------------------------------

def _scatter_mean_kernel(order_ref, gix_ref, inv_ref, x_ref, o_ref, acc_ref):
    del order_ref  # only used by the index maps
    e = pl.program_id(1)
    ne = pl.num_programs(1)
    g = gix_ref[e]
    prev_g = gix_ref[jnp.maximum(e - 1, 0)]
    next_g = gix_ref[jnp.minimum(e + 1, ne - 1)]
    first = jnp.logical_or(e == 0, prev_g != g)
    last = jnp.logical_or(e == ne - 1, next_g != g)

    @pl.when(first)
    def _():
        acc_ref[...] = jnp.zeros_like(acc_ref)

    acc_ref[...] += x_ref[0].astype(jnp.float32)

    @pl.when(last)
    def _():
        o_ref[0] = (acc_ref[...] * inv_ref[g]).astype(o_ref.dtype)


def scatter_mean_pallas(x_edges, order, gix, inv_counts, num_groups):
    """x_edges: (E, P, 128) visited in group-sorted order (via `order`),
    accumulated in f32 scratch, scaled by 1/count at the group boundary."""
    E, P, C = x_edges.shape
    tp = P
    if P > 1024:
        for cand in range(1024, 0, -8):
            if P % cand == 0:
                tp = cand
                break
    n_tiles = P // tp
    return pl.pallas_call(
        _scatter_mean_kernel,
        out_shape=jax.ShapeDtypeStruct((num_groups, P, C), x_edges.dtype),
        grid_spec=pltpu.PrefetchScalarGridSpec(
            num_scalar_prefetch=3,
            grid=(n_tiles, E),
            in_specs=[pl.BlockSpec(
                (1, tp, C), lambda p, e, order, gix, inv: (order[e], p, 0))],
            out_specs=pl.BlockSpec(
                (1, tp, C), lambda p, e, order, gix, inv: (gix[e], p, 0)),
            scratch_shapes=[pltpu.VMEM((tp, C), jnp.float32)],
        ),
        compiler_params=_cparams(("parallel", "arbitrary")),
    )(jnp.asarray(order), jnp.asarray(gix), jnp.asarray(inv_counts), x_edges)


# ----------------------------------------------------------------------------
# Convex upsampling (softmax over 9 taps, 8x8 sub-pixels)
# ----------------------------------------------------------------------------

def _cvx_kernel(mask_ref, dat_ref, o_ref):
    m = mask_ref[0].astype(jnp.float32)      # (th, W, 576), chan = tap*64 + s
    d = dat_ref[0].astype(jnp.float32)       # (th, W, 9)
    parts = [m[:, :, 64 * t:64 * (t + 1)] for t in range(9)]
    mx = parts[0]
    for t in range(1, 9):
        mx = jnp.maximum(mx, parts[t])
    den = jnp.zeros_like(mx)
    num = jnp.zeros_like(mx)
    for t in range(9):
        e = jnp.exp(parts[t] - mx)
        den = den + e
        num = num + e * d[:, :, t:t + 1]
    o_ref[0] = num / den


def _pick_rows(H, W, row_bytes, budget=4 << 20):
    max_th = max(1, min(H, budget // max(1, W * row_bytes)))
    for t in range(max_th, 0, -1):
        if H % t == 0 and (t == H or t % 8 == 0):
            return t
    return H


def cvx_upsample(data, mask):
    """data: (BN, H, W, 1) f32; mask: (BN, H, W, 576) -> (BN, 8H, 8W, 1)."""
    BN, H, W, _ = data.shape
    d2 = data[..., 0]
    dp = jnp.pad(d2, ((0, 0), (1, 1), (1, 1)))
    dtaps = jnp.stack([dp[:, i:i + H, j:j + W]
                       for i in range(3) for j in range(3)], axis=-1)
    th = _pick_rows(H, W, 576 * 2 + 9 * 4 + 64 * 4)
    # TODO(synk): pack the output lane-dense (W*64 lanes) once verified.
    out = pl.pallas_call(
        _cvx_kernel,
        out_shape=jax.ShapeDtypeStruct((BN, H, W, 64), jnp.float32),
        grid=(BN, H // th),
        in_specs=[pl.BlockSpec((1, th, W, 576), lambda b, h: (b, h, 0, 0)),
                  pl.BlockSpec((1, th, W, 9), lambda b, h: (b, h, 0, 0))],
        out_specs=pl.BlockSpec((1, th, W, 64), lambda b, h: (b, h, 0, 0)),
        compiler_params=_cparams(("parallel", "parallel")),
    )(mask.astype(jnp.bfloat16), dtaps.astype(jnp.float32))
    up = out.reshape(BN, H, W, 8, 8).transpose(0, 1, 3, 2, 4)
    return up.reshape(BN, 8 * H, 8 * W, 1)


def upsample_disp(disp, mask):
    B, num, H, W = disp.shape
    d = disp.reshape(B * num, H, W, 1)
    m = jnp.transpose(mask.reshape(B * num, 576, H, W), (0, 2, 3, 1))
    return cvx_upsample(d, m).reshape(B, num, 8 * H, 8 * W)


# ----------------------------------------------------------------------------
# Parameters (torch-shaped init, then packed / fused / padded for the kernels)
# ----------------------------------------------------------------------------

def _init_conv(key, k, cin, cout):
    kw, kb = jax.random.split(key)
    scale = 1.0 / np.sqrt(cin * k * k)
    w = jax.random.uniform(kw, (k, k, cin, cout), jnp.float32, -scale, scale)
    b = jax.random.uniform(kb, (cout,), jnp.float32, -scale, scale)
    return w, b


def _pack_w(w, b):
    k = w.shape[0]
    cin, cout = w.shape[2], w.shape[3]
    cinp = _round_up(cin, 128)
    coutp = _round_up(cout, 128)
    wp = jnp.zeros((k, k, cinp, coutp), jnp.float32)
    wp = wp.at[:, :, :cin, :cout].set(w)
    wm = wp.reshape(k * k * cinp, coutp).astype(jnp.bfloat16)
    bm = jnp.zeros((1, coutp), jnp.float32).at[0, :cout].set(b)
    return wm, bm


def init_params(key):
    defs = [
        ("corr1", 1, 196, 128), ("corr2", 3, 128, 128),
        ("flow1", 7, 4, 128), ("flow2", 3, 128, 64),
        ("convz", 3, 448, 128), ("convr", 3, 448, 128), ("convq", 3, 448, 128),
        ("delta1", 3, 128, 128), ("delta2", 3, 128, 2),
        ("weight1", 3, 128, 128), ("weight2", 3, 128, 2),
        ("agg_conv1", 3, 128, 128), ("agg_conv2", 3, 128, 128),
        ("agg_eta", 3, 128, 1), ("agg_upmask", 1, 128, 576),
    ]
    keys = jax.random.split(key, len(defs))
    raw = {n: _init_conv(kk, k, ci, co)
           for (n, k, ci, co), kk in zip(defs, keys)}

    p = {}
    p["corr1"] = _pack_w(*raw["corr1"])
    p["corr2"] = _pack_w(*raw["corr2"])
    # 7x7 flow conv executed as a 1x1 conv on the 49-tap unfold (196 channels).
    wf, bf = raw["flow1"]
    p["flow1"] = _pack_w(wf.reshape(1, 1, 49 * 4, 128), bf)
    p["flow2"] = _pack_w(*raw["flow2"])
    # ConvGRU: convz + convr fused along Cout (same [h | inp|corr|flow] input).
    wz, bz = raw["convz"]
    wr, br = raw["convr"]
    p["convzr"] = _pack_w(jnp.concatenate([wz, wr], axis=3),
                          jnp.concatenate([bz, br]))
    p["convq"] = _pack_w(*raw["convq"])
    # delta1 + weight1 fused (same input net).
    wd1, bd1 = raw["delta1"]
    ww1, bw1 = raw["weight1"]
    p["dw1"] = _pack_w(jnp.concatenate([wd1, ww1], axis=3),
                       jnp.concatenate([bd1, bw1]))
    # delta2 + weight2 fused as a block-diagonal conv over the 256-ch dw1.
    wd2, bd2 = raw["delta2"]
    ww2, bw2 = raw["weight2"]
    wh = jnp.zeros((3, 3, 256, 4), jnp.float32)
    wh = wh.at[:, :, :128, 0:2].set(wd2)
    wh = wh.at[:, :, 128:, 2:4].set(ww2)
    p["head"] = _pack_w(wh, jnp.concatenate([bd2, bw2]))
    p["agg_conv1"] = _pack_w(*raw["agg_conv1"])
    p["agg_conv2"] = _pack_w(*raw["agg_conv2"])
    p["agg_eta"] = _pack_w(*raw["agg_eta"])
    p["agg_upmask"] = _pack_w(*raw["agg_upmask"])
    return p


# ----------------------------------------------------------------------------
# GraphAgg + UpdateModule forward
# ----------------------------------------------------------------------------

def _nchw_to_nhwc_bf16(t, B, num, H, W):
    c = t.shape[2]
    x = t.reshape(B * num, c, H, W)
    return jnp.transpose(x, (0, 2, 3, 1)).astype(jnp.bfloat16)


def graph_agg_tail(params, agg1, ii_np, B, num, H, W):
    """scatter_mean over edges -> conv2/eta/upmask (agg1 = relu(conv1(net)))."""
    ix = np.unique(np.asarray(ii_np), return_inverse=True)[1].astype(np.int32)
    G = int(ix.max()) + 1
    order = np.argsort(ix, kind="stable").astype(np.int32)
    gix = ix[order]                                        # non-decreasing
    counts = np.bincount(ix, minlength=G).astype(np.float32)
    inv_counts = (1.0 / counts).astype(np.float32)

    if B == 1:
        x_edges = agg1.reshape(num, H * W, 128)
    else:
        # TODO(synk): B > 1 needs one (B,num)->(num,B) transpose pass here.
        x_edges = agg1.reshape(B, num, H * W, 128).transpose(1, 0, 2, 3)
        x_edges = x_edges.reshape(num, B * H * W, 128)

    agg = scatter_mean_pallas(x_edges, order, gix, inv_counts, G)

    if B == 1:
        agg_g = agg.reshape(G, H, W, 128)
    else:
        agg_g = agg.reshape(G, B, H * W, 128).transpose(1, 0, 2, 3)
        agg_g = agg_g.reshape(B * G, H, W, 128)

    eta_full, upmask_full = agg_tail_fused(
        agg_g, params["agg_conv2"], params["agg_eta"], params["agg_upmask"])

    eta = eta_full[..., 0].reshape(B, G, H, W)             # already * 0.01
    upmask = jnp.transpose(upmask_full[..., :576], (0, 3, 1, 2))
    upmask = upmask.reshape(B, G, 576, H, W)
    return eta, upmask


def update_forward(params, net, inp, corr, flow, ii_np):
    """UpdateModule.forward (RAFT-SLAM update operator) + GraphAgg."""
    B, num, ch, H, W = net.shape

    # single NCHW -> NHWC / bf16 conversion at the module boundary
    net_h = _nchw_to_nhwc_bf16(net, B, num, H, W)      # (BN, H, W, 128)
    inp_h = _nchw_to_nhwc_bf16(inp, B, num, H, W)
    corr_h = _pad_ch(_nchw_to_nhwc_bf16(corr, B, num, H, W), 256)
    flow_h = _nchw_to_nhwc_bf16(flow, B, num, H, W)    # (BN, H, W, 4)
    flow_unf = _pad_ch(_unfold_nhwc(flow_h, 7, 3), 256)

    # fused correlation / flow encoders (intermediates stay in VMEM)
    c = encoder_fused(corr_h, params["corr1"], params["corr2"])
    f = encoder_fused(flow_unf, params["flow1"], params["flow2"])
    # f channels 64..127 are exact zeros and line up with the zero-padded GRU
    # weight rows, so no slicing is needed below.

    # fused ConvGRU (RAFT-style gating); z / r*h never hit HBM
    net_new = gru_fused(net_h, inp_h, c, f, params["convzr"], params["convq"])

    # fused delta/weight heads + GraphAgg conv1 (GradientClip == identity)
    head, agg1 = head_agg_fused(net_new, params["dw1"], params["head"],
                                params["agg_conv1"])
    delta = head[..., 0:2].astype(jnp.float32).reshape(B, num, H, W, 2)
    weight = head[..., 2:4].astype(jnp.float32).reshape(B, num, H, W, 2)

    eta, upmask = graph_agg_tail(params, agg1, ii_np, B, num, H, W)

    net_out = jnp.transpose(net_new, (0, 3, 1, 2)).astype(jnp.float32)
    net_out = net_out.reshape(B, num, 128, H, W)
    return net_out, delta, weight, eta, upmask


# ----------------------------------------------------------------------------
# Demo
# ----------------------------------------------------------------------------

if __name__ == "__main__":
    key = jax.random.PRNGKey(0)
    kp, k1, k2, k3, k4, k5 = jax.random.split(key, 6)
    params = init_params(kp)

    B, num_edges, H, W = 1, 4, 8, 8
    ii = np.array([0, 0, 1, 1], dtype=np.int64)            # -> 2 unique frames
    G = len(np.unique(ii))

    net = jnp.tanh(jax.random.normal(k1, (B, num_edges, 128, H, W), jnp.float32))
    inp = jax.nn.relu(jax.random.normal(k2, (B, num_edges, 128, H, W), jnp.float32))
    corr = jax.random.normal(k3, (B, num_edges, 196, H, W), jnp.float32)
    motion = jnp.clip(4.0 * jax.random.normal(
        k4, (B, num_edges, 4, H, W), jnp.float32), -64.0, 64.0)
    disps = jnp.abs(jax.random.normal(k5, (B, G, H, W), jnp.float32)) + 0.1

    net_out, delta, weight, eta, upmask = update_forward(
        params, net, inp, corr, motion, ii)
    disp_up = upsample_disp(disps, upmask)

    for t in (net_out, delta, weight, eta, upmask, disp_up):
        jax.block_until_ready(t)

    assert net_out.shape == (B, num_edges, 128, H, W)
    assert delta.shape == (B, num_edges, H, W, 2)
    assert weight.shape == (B, num_edges, H, W, 2)
    assert eta.shape == (B, G, H, W)
    assert upmask.shape == (B, G, 576, H, W)
    assert disp_up.shape == (B, G, 8 * H, 8 * W)
    print("KERNEL_OK")
</pallas_src>

<mosaic_0001>
module attributes {stable_mosaic.version = 11 : i64} {
  func.func @kernel(%arg0: i32, %arg1: memref<1x8x8x256xbf16, #tpu.memory_space<vmem>>, %arg2: memref<256x128xbf16, #tpu.memory_space<vmem>>, %arg3: memref<1x128xf32, #tpu.memory_space<vmem>>, %arg4: memref<1152x128xbf16, #tpu.memory_space<vmem>>, %arg5: memref<1x128xf32, #tpu.memory_space<vmem>>, %arg6: memref<1x8x8x128xbf16, #tpu.memory_space<vmem>>, %arg7: memref<176x128xbf16, #tpu.memory_space<vmem>>) attributes {dimension_semantics = [#tpu.dimension_semantics<parallel>], iteration_bounds = array<i64: 4>, scalar_prefetch = 0 : i64, scratch_operands = 1 : i64, tpu.core_type = #tpu.core_type<tc>, window_params = [{transform_indices = @transform_0, window_bounds = array<i64: 1, 8, 8, 256>}, {pipeline_mode = #tpu.pipeline_mode<synchronous>, transform_indices = @transform_1, window_bounds = array<i64: 256, 128>}, {pipeline_mode = #tpu.pipeline_mode<synchronous>, transform_indices = @transform_2, window_bounds = array<i64: 1, 128>}, {pipeline_mode = #tpu.pipeline_mode<synchronous>, transform_indices = @transform_3, window_bounds = array<i64: 1152, 128>}, {pipeline_mode = #tpu.pipeline_mode<synchronous>, transform_indices = @transform_4, window_bounds = array<i64: 1, 128>}, {transform_indices = @transform_5, window_bounds = array<i64: 1, 8, 8, 128>}]} {
    %c0 = arith.constant 0 : index
    %c0_0 = arith.constant 0 : index
    %c0_1 = arith.constant 0 : index
    %c0_2 = arith.constant 0 : index
    %0 = vector.load %arg1[%c0, %c0_0, %c0_1, %c0_2] : memref<1x8x8x256xbf16, #tpu.memory_space<vmem>>, vector<1x8x8x256xbf16>
    %1 = vector.shape_cast %0 : vector<1x8x8x256xbf16> to vector<8x8x256xbf16>
    %2 = vector.shape_cast %1 : vector<8x8x256xbf16> to vector<64x256xbf16>
    %c0_3 = arith.constant 0 : index
    %c0_4 = arith.constant 0 : index
    %3 = vector.load %arg2[%c0_3, %c0_4] : memref<256x128xbf16, #tpu.memory_space<vmem>>, vector<256x128xbf16>
    %cst = arith.constant dense<0.000000e+00> : vector<64x128xf32>
    %4 = tpu.matmul %2, %3, %cst {dimension_numbers = #tpu.dot_dimension_numbers<[1], [0], [0], [1], [0, 0, 1, 1], [], []>} : vector<64x256xbf16>, vector<256x128xbf16>, vector<64x128xf32> -> vector<64x128xf32>
    %c0_5 = arith.constant 0 : index
    %c0_6 = arith.constant 0 : index
    %5 = vector.load %arg3[%c0_5, %c0_6] : memref<1x128xf32, #tpu.memory_space<vmem>>, vector<1x128xf32>
    %6 = vector.broadcast %5 : vector<1x128xf32> to vector<64x128xf32>
    %7 = arith.addf %4, %6 : vector<64x128xf32>
    %cst_7 = arith.constant 0.000000e+00 : f32
    %8 = vector.broadcast %cst_7 : f32 to vector<64x128xf32>
    %9 = arith.maximumf %7, %8 : vector<64x128xf32>
    %10 = vector.shape_cast %9 : vector<64x128xf32> to vector<8x8x128xf32>
    %11 = arith.truncf %10 : vector<8x8x128xf32> to vector<8x8x128xbf16>
    %cst_8 = arith.constant 0.000000e+00 : bf16
    %12 = vector.broadcast %cst_8 : bf16 to vector<176x128xbf16>
    %c0_9 = arith.constant 0 : index
    %c0_10 = arith.constant 0 : index
    %13 = vector.load %arg7[%c0_9, %c0_10] : memref<176x128xbf16, #tpu.memory_space<vmem>>, vector<176x128xbf16>
    tpu.vector_store %arg7[%c0_9, %c0_10], %12 {strides = array<i32>} : memref<176x128xbf16, #tpu.memory_space<vmem>>, vector<176x128xbf16>,
    %14 = vector.extract_strided_slice %11 {offsets = [0, 0, 0], sizes = [1, 8, 128], strides = [1, 1, 1]} : vector<8x8x128xbf16> to vector<1x8x128xbf16>
    %15 = vector.shape_cast %14 : vector<1x8x128xbf16> to vector<8x128xbf16>
    %c17 = arith.constant 17 : index
    %c0_11 = arith.constant 0 : index
    %16 = vector.load %arg7[%c17, %c0_11] : memref<176x128xbf16, #tpu.memory_space<vmem>>, vector<8x128xbf16>
    tpu.vector_store %arg7[%c17, %c0_11], %15 {strides = array<i32>} : memref<176x128xbf16, #tpu.memory_space<vmem>>, vector<8x128xbf16>,
    %17 = vector.extract_strided_slice %11 {offsets = [1, 0, 0], sizes = [1, 8, 128], strides = [1, 1, 1]} : vector<8x8x128xbf16> to vector<1x8x128xbf16>
    %18 = vector.shape_cast %17 : vector<1x8x128xbf16> to vector<8x128xbf16>
    %c33 = arith.constant 33 : index
    %c0_12 = arith.constant 0 : index
    %19 = vector.load %arg7[%c33, %c0_12] : memref<176x128xbf16, #tpu.memory_space<vmem>>, vector<8x128xbf16>
    tpu.vector_store %arg7[%c33, %c0_12], %18 {strides = array<i32>} : memref<176x128xbf16, #tpu.memory_space<vmem>>, vector<8x128xbf16>,
    %20 = vector.extract_strided_slice %11 {offsets = [2, 0, 0], sizes = [1, 8, 128], strides = [1, 1, 1]} : vector<8x8x128xbf16> to vector<1x8x128xbf16>
    %21 = vector.shape_cast %20 : vector<1x8x128xbf16> to vector<8x128xbf16>
    %c49 = arith.constant 49 : index
    %c0_13 = arith.constant 0 : index
    %22 = vector.load %arg7[%c49, %c0_13] : memref<176x128xbf16, #tpu.memory_space<vmem>>, vector<8x128xbf16>
    tpu.vector_store %arg7[%c49, %c0_13], %21 {strides = array<i32>} : memref<176x128xbf16, #tpu.memory_space<vmem>>, vector<8x128xbf16>,
    %23 = vector.extract_strided_slice %11 {offsets = [3, 0, 0], sizes = [1, 8, 128], strides = [1, 1, 1]} : vector<8x8x128xbf16> to vector<1x8x128xbf16>
    %24 = vector.shape_cast %23 : vector<1x8x128xbf16> to vector<8x128xbf16>
    %c65 = arith.constant 65 : index
    %c0_14 = arith.constant 0 : index
    %25 = vector.load %arg7[%c65, %c0_14] : memref<176x128xbf16, #tpu.memory_space<vmem>>, vector<8x128xbf16>
    tpu.vector_store %arg7[%c65, %c0_14], %24 {strides = array<i32>} : memref<176x128xbf16, #tpu.memory_space<vmem>>, vector<8x128xbf16>,
    %26 = vector.extract_strided_slice %11 {offsets = [4, 0, 0], sizes = [1, 8, 128], strides = [1, 1, 1]} : vector<8x8x128xbf16> to vector<1x8x128xbf16>
    %27 = vector.shape_cast %26 : vector<1x8x128xbf16> to vector<8x128xbf16>
    %c81 = arith.constant 81 : index
    %c0_15 = arith.constant 0 : index
    %28 = vector.load %arg7[%c81, %c0_15] : memref<176x128xbf16, #tpu.memory_space<vmem>>, vector<8x128xbf16>
    tpu.vector_store %arg7[%c81, %c0_15], %27 {strides = array<i32>} : memref<176x128xbf16, #tpu.memory_space<vmem>>, vector<8x128xbf16>,
    %29 = vector.extract_strided_slice %11 {offsets = [5, 0, 0], sizes = [1, 8, 128], strides = [1, 1, 1]} : vector<8x8x128xbf16> to vector<1x8x128xbf16>
    %30 = vector.shape_cast %29 : vector<1x8x128xbf16> to vector<8x128xbf16>
    %c97 = arith.constant 97 : index
    %c0_16 = arith.constant 0 : index
    %31 = vector.load %arg7[%c97, %c0_16] : memref<176x128xbf16, #tpu.memory_space<vmem>>, vector<8x128xbf16>
    tpu.vector_store %arg7[%c97, %c0_16], %30 {strides = array<i32>} : memref<176x128xbf16, #tpu.memory_space<vmem>>, vector<8x128xbf16>,
    %32 = vector.extract_strided_slice %11 {offsets = [6, 0, 0], sizes = [1, 8, 128], strides = [1, 1, 1]} : vector<8x8x128xbf16> to vector<1x8x128xbf16>
    %33 = vector.shape_cast %32 : vector<1x8x128xbf16> to vector<8x128xbf16>
    %c113 = arith.constant 113 : index
    %c0_17 = arith.constant 0 : index
    %34 = vector.load %arg7[%c113, %c0_17] : memref<176x128xbf16, #tpu.memory_space<vmem>>, vector<8x128xbf16>
    tpu.vector_store %arg7[%c113, %c0_17], %33 {strides = array<i32>} : memref<176x128xbf16, #tpu.memory_space<vmem>>, vector<8x128xbf16>,
    %35 = vector.extract_strided_slice %11 {offsets = [7, 0, 0], sizes = [1, 8, 128], strides = [1, 1, 1]} : vector<8x8x128xbf16> to vector<1x8x128xbf16>
    %36 = vector.shape_cast %35 : vector<1x8x128xbf16> to vector<8x128xbf16>
    %c129 = arith.constant 129 : index
    %c0_18 = arith.constant 0 : index
    %37 = vector.load %arg7[%c129, %c0_18] : memref<176x128xbf16, #tpu.memory_space<vmem>>, vector<8x128xbf16>
    tpu.vector_store %arg7[%c129, %c0_18], %36 {strides = array<i32>} : memref<176x128xbf16, #tpu.memory_space<vmem>>, vector<8x128xbf16>,
    %cst_19 = arith.constant 0.000000e+00 : f32
    %38 = vector.broadcast %cst_19 : f32 to vector<128x128xf32>
    %c0_20 = arith.constant 0 : index
    %c0_21 = arith.constant 0 : index
    %39 = vector.load %arg7[%c0_20, %c0_21] : memref<176x128xbf16, #tpu.memory_space<vmem>>, vector<128x128xbf16>
    %c0_22 = arith.constant 0 : index
    %c0_23 = arith.constant 0 : index
    %40 = vector.load %arg4[%c0_22, %c0_23] : memref<1152x128xbf16, #tpu.memory_space<vmem>>, vector<128x128xbf16>
    %cst_24 = arith.constant dense<0.000000e+00> : vector<128x128xf32>
    %41 = tpu.matmul %39, %40, %cst_24 {dimension_numbers = #tpu.dot_dimension_numbers<[1], [0], [0], [1], [0, 0, 1, 1], [], []>} : vector<128x128xbf16>, vector<128x128xbf16>, vector<128x128xf32> -> vector<128x128xf32>
    %42 = arith.addf %38, %41 : vector<128x128xf32>
    %c1 = arith.constant 1 : index
    %c0_25 = arith.constant 0 : index
    %43 = vector.load %arg7[%c1, %c0_25] : memref<176x128xbf16, #tpu.memory_space<vmem>>, vector<128x128xbf16>
    %c128 = arith.constant 128 : index
    %c0_26 = arith.constant 0 : index
    %44 = vector.load %arg4[%c128, %c0_26] : memref<1152x128xbf16, #tpu.memory_space<vmem>>, vector<128x128xbf16>
    %cst_27 = arith.constant dense<0.000000e+00> : vector<128x128xf32>
    %45 = tpu.matmul %43, %44, %cst_27 {dimension_numbers = #tpu.dot_dimension_numbers<[1], [0], [0], [1], [0, 0, 1, 1], [], []>} : vector<128x128xbf16>, vector<128x128xbf16>, vector<128x128xf32> -> vector<128x128xf32>
    %46 = arith.addf %42, %45 : vector<128x128xf32>
    %c2 = arith.constant 2 : index
    %c0_28 = arith.constant 0 : index
    %47 = vector.load %arg7[%c2, %c0_28] : memref<176x128xbf16, #tpu.memory_space<vmem>>, vector<128x128xbf16>
    %c256 = arith.constant 256 : index
    %c0_29 = arith.constant 0 : index
    %48 = vector.load %arg4[%c256, %c0_29] : memref<1152x128xbf16, #tpu.memory_space<vmem>>, vector<128x128xbf16>
    %cst_30 = arith.constant dense<0.000000e+00> : vector<128x128xf32>
    %49 = tpu.matmul %47, %48, %cst_30 {dimension_numbers = #tpu.dot_dimension_numbers<[1], [0], [0], [1], [0, 0, 1, 1], [], []>} : vector<128x128xbf16>, vector<128x128xbf16>, vector<128x128xf32> -> vector<128x128xf32>
    %50 = arith.addf %46, %49 : vector<128x128xf32>
    %c16 = arith.constant 16 : index
    %c0_31 = arith.constant 0 : index
    %51 = vector.load %arg7[%c16, %c0_31] : memref<176x128xbf16, #tpu.memory_space<vmem>>, vector<128x128xbf16>
    %c384 = arith.constant 384 : index
    %c0_32 = arith.constant 0 : index
    %52 = vector.load %arg4[%c384, %c0_32] : memref<1152x128xbf16, #tpu.memory_space<vmem>>, vector<128x128xbf16>
    %cst_33 = arith.constant dense<0.000000e+00> : vector<128x128xf32>
    %53 = tpu.matmul %51, %52, %cst_33 {dimension_numbers = #tpu.dot_dimension_numbers<[1], [0], [0], [1], [0, 0, 1, 1], [], []>} : vector<128x128xbf16>, vector<128x128xbf16>, vector<128x128xf32> -> vector<128x128xf32>
    %54 = arith.addf %50, %53 : vector<128x128xf32>
    %c17_34 = arith.constant 17 : index
    %c0_35 = arith.constant 0 : index
    %55 = vector.load %arg7[%c17_34, %c0_35] : memref<176x128xbf16, #tpu.memory_space<vmem>>, vector<128x128xbf16>
    %c512 = arith.constant 512 : index
    %c0_36 = arith.constant 0 : index
    %56 = vector.load %arg4[%c512, %c0_36] : memref<1152x128xbf16, #tpu.memory_space<vmem>>, vector<128x128xbf16>
    %cst_37 = arith.constant dense<0.000000e+00> : vector<128x128xf32>
    %57 = tpu.matmul %55, %56, %cst_37 {dimension_numbers = #tpu.dot_dimension_numbers<[1], [0], [0], [1], [0, 0, 1, 1], [], []>} : vector<128x128xbf16>, vector<128x128xbf16>, vector<128x128xf32> -> vector<128x128xf32>
    %58 = arith.addf %54, %57 : vector<128x128xf32>
    %c18 = arith.constant 18 : index
    %c0_38 = arith.constant 0 : index
    %59 = vector.load %arg7[%c18, %c0_38] : memref<176x128xbf16, #tpu.memory_space<vmem>>, vector<128x128xbf16>
    %c640 = arith.constant 640 : index
    %c0_39 = arith.constant 0 : index
    %60 = vector.load %arg4[%c640, %c0_39] : memref<1152x128xbf16, #tpu.memory_space<vmem>>, vector<128x128xbf16>
    %cst_40 = arith.constant dense<0.000000e+00> : vector<128x128xf32>
    %61 = tpu.matmul %59, %60, %cst_40 {dimension_numbers = #tpu.dot_dimension_numbers<[1], [0], [0], [1], [0, 0, 1, 1], [], []>} : vector<128x128xbf16>, vector<128x128xbf16>, vector<128x128xf32> -> vector<128x128xf32>
    %62 = arith.addf %58, %61 : vector<128x128xf32>
    %c32 = arith.constant 32 : index
    %c0_41 = arith.constant 0 : index
    %63 = vector.load %arg7[%c32, %c0_41] : memref<176x128xbf16, #tpu.memory_space<vmem>>, vector<128x128xbf16>
    %c768 = arith.constant 768 : index
    %c0_42 = arith.constant 0 : index
    %64 = vector.load %arg4[%c768, %c0_42] : memref<1152x128xbf16, #tpu.memory_space<vmem>>, vector<128x128xbf16>
    %cst_43 = arith.constant dense<0.000000e+00> : vector<128x128xf32>
    %65 = tpu.matmul %63, %64, %cst_43 {dimension_numbers = #tpu.dot_dimension_numbers<[1], [0], [0], [1], [0, 0, 1, 1], [], []>} : vector<128x128xbf16>, vector<128x128xbf16>, vector<128x128xf32> -> vector<128x128xf32>
    %66 = arith.addf %62, %65 : vector<128x128xf32>
    %c33_44 = arith.constant 33 : index
    %c0_45 = arith.constant 0 : index
    %67 = vector.load %arg7[%c33_44, %c0_45] : memref<176x128xbf16, #tpu.memory_space<vmem>>, vector<128x128xbf16>
    %c896 = arith.constant 896 : index
    %c0_46 = arith.constant 0 : index
    %68 = vector.load %arg4[%c896, %c0_46] : memref<1152x128xbf16, #tpu.memory_space<vmem>>, vector<128x128xbf16>
    %cst_47 = arith.constant dense<0.000000e+00> : vector<128x128xf32>
    %69 = tpu.matmul %67, %68, %cst_47 {dimension_numbers = #tpu.dot_dimension_numbers<[1], [0], [0], [1], [0, 0, 1, 1], [], []>} : vector<128x128xbf16>, vector<128x128xbf16>, vector<128x128xf32> -> vector<128x128xf32>
    %70 = arith.addf %66, %69 : vector<128x128xf32>
    %c34 = arith.constant 34 : index
    %c0_48 = arith.constant 0 : index
    %71 = vector.load %arg7[%c34, %c0_48] : memref<176x128xbf16, #tpu.memory_space<vmem>>, vector<128x128xbf16>
    %c1024 = arith.constant 1024 : index
    %c0_49 = arith.constant 0 : index
    %72 = vector.load %arg4[%c1024, %c0_49] : memref<1152x128xbf16, #tpu.memory_space<vmem>>, vector<128x128xbf16>
    %cst_50 = arith.constant dense<0.000000e+00> : vector<128x128xf32>
    %73 = tpu.matmul %71, %72, %cst_50 {dimension_numbers = #tpu.dot_dimension_numbers<[1], [0], [0], [1], [0, 0, 1, 1], [], []>} : vector<128x128xbf16>, vector<128x128xbf16>, vector<128x128xf32> -> vector<128x128xf32>
    %74 = arith.addf %70, %73 : vector<128x128xf32>
    %c0_51 = arith.constant 0 : index
    %c0_52 = arith.constant 0 : index
    %75 = vector.load %arg5[%c0_51, %c0_52] : memref<1x128xf32, #tpu.memory_space<vmem>>, vector<1x128xf32>
    %76 = vector.broadcast %75 : vector<1x128xf32> to vector<128x128xf32>
    %77 = arith.addf %74, %76 : vector<128x128xf32>
    %78 = vector.shape_cast %77 : vector<128x128xf32> to vector<8x16x128xf32>
    %79 = vector.extract_strided_slice %78 {offsets = [0, 0, 0], sizes = [8, 8, 128], strides = [1, 1, 1]} : vector<8x16x128xf32> to vector<8x8x128xf32>
    %cst_53 = arith.constant 0.000000e+00 : f32
    %80 = vector.broadcast %cst_53 : f32 to vector<8x8x128xf32>
    %81 = arith.maximumf %79, %80 : vector<8x8x128xf32>
    %82 = arith.truncf %81 : vector<8x8x128xf32> to vector<8x8x128xbf16>
    %c0_54 = arith.constant 0 : index
    %c0_55 = arith.constant 0 : index
    %c0_56 = arith.constant 0 : index
    %c0_57 = arith.constant 0 : index
    %83 = vector.load %arg6[%c0_54, %c0_55, %c0_56, %c0_57] : memref<1x8x8x128xbf16, #tpu.memory_space<vmem>>, vector<1x8x8x128xbf16>
    %84 = vector.shape_cast %83 : vector<1x8x8x128xbf16> to vector<8x8x128xbf16>
    %85 = vector.shape_cast %82 : vector<8x8x128xbf16> to vector<1x8x8x128xbf16>
    tpu.vector_store %arg6[%c0_54, %c0_55, %c0_56, %c0_57], %85 {strides = array<i32>} : memref<1x8x8x128xbf16, #tpu.memory_space<vmem>>, vector<1x8x8x128xbf16>,
    return
  }
  func.func @transform_0(%arg0: i32) -> (i32, i32, i32, i32) {
    %c0_i32 = arith.constant 0 : i32
    %c0_i32_0 = arith.constant 0 : i32
    %c0_i32_1 = arith.constant 0 : i32
    %c0_i32_2 = arith.constant 0 : i32
    return %arg0, %c0_i32, %c0_i32_0, %c0_i32_1 : i32, i32, i32, i32
  }
  func.func @transform_1(%arg0: i32) -> (i32, i32) {
    %c0_i32 = arith.constant 0 : i32
    %c0_i32_0 = arith.constant 0 : i32
    %c0_i32_1 = arith.constant 0 : i32
    return %c0_i32, %c0_i32_0 : i32, i32
  }
  func.func @transform_2(%arg0: i32) -> (i32, i32) {
    %c0_i32 = arith.constant 0 : i32
    %c0_i32_0 = arith.constant 0 : i32
    %c0_i32_1 = arith.constant 0 : i32
    return %c0_i32, %c0_i32_0 : i32, i32
  }
  func.func @transform_3(%arg0: i32) -> (i32, i32) {
    %c0_i32 = arith.constant 0 : i32
    %c0_i32_0 = arith.constant 0 : i32
    %c0_i32_1 = arith.constant 0 : i32
    return %c0_i32, %c0_i32_0 : i32, i32
  }
  func.func @transform_4(%arg0: i32) -> (i32, i32) {
    %c0_i32 = arith.constant 0 : i32
    %c0_i32_0 = arith.constant 0 : i32
    %c0_i32_1 = arith.constant 0 : i32
    return %c0_i32, %c0_i32_0 : i32, i32
  }
  func.func @transform_5(%arg0: i32) -> (i32, i32, i32, i32) {
    %c0_i32 = arith.constant 0 : i32
    %c0_i32_0 = arith.constant 0 : i32
    %c0_i32_1 = arith.constant 0 : i32
    %c0_i32_2 = arith.constant 0 : i32
    return %arg0, %c0_i32, %c0_i32_0, %c0_i32_1 : i32, i32, i32, i32
  }
}

</mosaic_0001>

<llo_original>
// kernel: tpu_custom_call.1
$region0: #{tpu_custom_call.1}
  #allocation0 [shape = 'u32[]', space=smem, size = 0x4, offset = 0x4, fixed_abs, tag = 'smem constant byte address 0x4 - core index']
  #allocation1 [shape = 'u32[144,128]{1,0:T(1,128)}', space=vmem, size = 0x12000, scoped, tag = 'internal scratch']
  #allocation2 [shape = 'bf16[176,128]{1,0:T(8,128)(2,1)}', space=vmem, size = 0xb000, scoped, tag = 'scratch operand']
  %s0 = inlined_call_operand.hbm [shape: bf16[4,8,8,256], index: 0, kind: input, shape index: {}]
  %s1 = inlined_call_operand.hbm [shape: bf16[256,128], index: 1, kind: input, shape index: {}]
  %s2 = inlined_call_operand.vmem [shape: f32[1,128], index: 2, kind: input, shape index: {}]
  %s3 = inlined_call_operand.hbm [shape: bf16[1152,128], index: 3, kind: input, shape index: {}]
  %s4 = inlined_call_operand.vmem [shape: f32[1,128], index: 4, kind: input, shape index: {}]
  %s5 = inlined_call_operand.hbm [shape: bf16[4,8,8,128], index: 5, kind: output, shape index: {}]
  %s6 = sld [smem:[#allocation0]]
  $region65: #{tpu_custom_call.1} parent=0
    _
  %s8 = ssub.s32 1, %s6
  %s9 = scalar_select 0, %s8, %s6
  $region1: #{tpu_custom_call.1} parent=0
    #allocation3 [shape = 'u8[65536]{0}', space=vmem, size = 0x10000, scoped, tag = 'input window, operand 0']
    #allocation4 [shape = 's32[2]{0}', space=sflag, size = 0x8, scoped, tag = 'scoped memory for tpu_custom_call.1']
    #allocation5 [shape = 's32[2]{0}', space=sflag, size = 0x8, scoped, tag = 'scoped memory for tpu_custom_call.1']
    #allocation6 [shape = 'u8[65536]{0}', space=vmem, size = 0x10000, scoped, tag = 'input window, operand 1, single buffered']
    #allocation7 [shape = 's32[1]{0}', space=sflag, size = 0x4, scoped, tag = 'scoped memory for tpu_custom_call.1']
    #allocation8 [shape = 'u8[294912]{0}', space=vmem, size = 0x48000, scoped, tag = 'input window, operand 3, single buffered']
    #allocation9 [shape = 'u8[32768]{0}', space=vmem, size = 0x8000, scoped, tag = 'output window, operand 0']
    %10 = vsyncpa [#allocation4], 0
    %s11 = scalar_lea.sflag [#allocation4], 1
    %12 = vsyncpa %s11, 0
    %13 = vsyncpa [#allocation7], 0
    %14 = vsyncpa [#allocation5], 0
    %s15 = scalar_lea.sflag [#allocation5], 1
    %16 = vsyncpa %s15, 0
    loop: start=0, step=1, limit=6
    $region2: #{tpu_custom_call.1} parent=1 // loop_pre_header
      _
    $region3: #{tpu_custom_call.1} parent=1 // loop_header
      %s18 = sphi 0, %s22
      %p19 = scmp.ge.s32.totalorder %s18, 6
      %s28 = sphi 0, %s30
      %s31 = sphi 0, %s28
      %s32 = sphi 0, %s31
      %s48 = sphi 0, %s32
      %s52 = sphi 0, %s52
      %s54 = sphi 0, %s52
      %s55 = sphi 0, %s54
      %s69 = sphi 0, %s55
      %s73 = sphi 0, %s73
      %s75 = sphi 0, %s73
      %s76 = sphi 0, %s75
      %s90 = sphi 0, %s76
      %s94 = sphi 0, %s94
      %s96 = sphi 0, %s94
      %s97 = sphi 0, %s96
      %s111 = sphi 0, %s97
      %s115 = sphi 0, %s115
      %s117 = sphi 0, %s115
      %s118 = sphi 0, %s117
      %s132 = sphi 0, %s118
      %s138 = sphi 0, %s140
      %s141 = sphi 0, %s138
      %s142 = sphi 0, %s141
      %s158 = sphi 0, %s142
    $region4: #{tpu_custom_call.1} parent=1 // loop_header_branch
      %21 = sbr.rel (%p19) target = $region8
    $region5: #{tpu_custom_call.1} parent=1 // loop_body
      %s23 = ssub.s32 %s18, 1
      %s24 = ssub.s32 %s18, 2
      %s25 = sadd.s32 %s18, 1
      %s26 = ssub.s32 %s18, %s25
      %p27 = scmp.eq.s32.totalorder %s26, 0
      %s29 = sadd.s32 %s28, 1
      %s30 = scalar_select %p27, %s28, %s29
      %p33 = pneg %p27
      %p34 = scmp.eq.s32.totalorder %s18, 3
      %p35 = por %p33, %p34
      %p36 = scmp.ne.s32.totalorder %s28, %s31
      %p37 = scmp.eq.s32.totalorder %s18, 0
      %p38 = por %p36, %p37
      %p39 = scmp.ne.s32.totalorder %s28, %s31
      %p40 = scmp.eq.s32.totalorder %s23, 3
      %p41 = por %p39, %p40
      %p42 = scmp.ne.s32.totalorder %s31, %s32
      %p43 = scmp.eq.s32.totalorder %s23, 0
      %p44 = por %p42, %p43
      %p45 = scmp.ne.s32.totalorder %s31, %s32
      %p46 = scmp.eq.s32.totalorder %s24, 3
      %p47 = por %p45, %p46
      %p49 = scmp.ne.s32.totalorder %s32, %s48
      %p50 = scmp.eq.s32.totalorder %s24, 0
      %p51 = por %p49, %p50
      %s53 = sadd.s32 %s52, 1
      %p56 = scmp.eq.s32.totalorder %s18, 3
      %p57 = scmp.ne.s32.totalorder %s52, %s54
      %p58 = scmp.eq.s32.totalorder %s18, 0
      %p59 = por %p57, %p58
      %p60 = scmp.ne.s32.totalorder %s52, %s54
      %p61 = scmp.eq.s32.totalorder %s23, 3
      %p62 = por %p60, %p61
      %p63 = scmp.ne.s32.totalorder %s54, %s55
      %p64 = scmp.eq.s32.totalorder %s23, 0
      %p65 = por %p63, %p64
      %p66 = scmp.ne.s32.totalorder %s54, %s55
      %p67 = scmp.eq.s32.totalorder %s24, 3
      %p68 = por %p66, %p67
      %p70 = scmp.ne.s32.totalorder %s55, %s69
      %p71 = scmp.eq.s32.totalorder %s24, 0
      %p72 = por %p70, %p71
      %s74 = sadd.s32 %s73, 1
      %p77 = scmp.eq.s32.totalorder %s18, 3
      %p78 = scmp.ne.s32.totalorder %s73, %s75
      %p79 = scmp.eq.s32.totalorder %s18, 0
      %p80 = por %p78, %p79
      %p81 = scmp.ne.s32.totalorder %s73, %s75
      %p82 = scmp.eq.s32.totalorder %s23, 3
      %p83 = por %p81, %p82
      %p84 = scmp.ne.s32.totalorder %s75, %s76
      %p85 = scmp.eq.s32.totalorder %s23, 0
      %p86 = por %p84, %p85
      %p87 = scmp.ne.s32.totalorder %s75, %s76
      %p88 = scmp.eq.s32.totalorder %s24, 3
      %p89 = por %p87, %p88
      %p91 = scmp.ne.s32.totalorder %s76, %s90
      %p92 = scmp.eq.s32.totalorder %s24, 0
      %p93 = por %p91, %p92
      %s95 = sadd.s32 %s94, 1
      %p98 = scmp.eq.s32.totalorder %s18, 3
      %p99 = scmp.ne.s32.totalorder %s94, %s96
      %p100 = scmp.eq.s32.totalorder %s18, 0
      %p101 = por %p99, %p100
      %p102 = scmp.ne.s32.totalorder %s94, %s96
      %p103 = scmp.eq.s32.totalorder %s23, 3
      %p104 = por %p102, %p103
      %p105 = scmp.ne.s32.totalorder %s96, %s97
      %p106 = scmp.eq.s32.totalorder %s23, 0
      %p107 = por %p105, %p106
      %p108 = scmp.ne.s32.totalorder %s96, %s97
      %p109 = scmp.eq.s32.totalorder %s24, 3
      %p110 = por %p108, %p109
      %p112 = scmp.ne.s32.totalorder %s97, %s111
      %p113 = scmp.eq.s32.totalorder %s24, 0
      %p114 = por %p112, %p113
      %s116 = sadd.s32 %s115, 1
      %p119 = scmp.eq.s32.totalorder %s18, 3
      %p120 = scmp.ne.s32.totalorder %s115, %s117
      %p121 = scmp.eq.s32.totalorder %s18, 0
      %p122 = por %p120, %p121
      %p123 = scmp.ne.s32.totalorder %s115, %s117
      %p124 = scmp.eq.s32.totalorder %s23, 3
      %p125 = por %p123, %p124
      %p126 = scmp.ne.s32.totalorder %s117, %s118
      %p127 = scmp.eq.s32.totalorder %s23, 0
      %p128 = por %p126, %p127
      %p129 = scmp.ne.s32.totalorder %s117, %s118
      %p130 = scmp.eq.s32.totalorder %s24, 3
      %p131 = por %p129, %p130
      %p133 = scmp.ne.s32.totalorder %s118, %s132
      %p134 = scmp.eq.s32.totalorder %s24, 0
      %p135 = por %p133, %p134
      %s136 = ssub.s32 %s18, %s25
      %p137 = scmp.eq.s32.totalorder %s136, 0
      %s139 = sadd.s32 %s138, 1
      %s140 = scalar_select %p137, %s138, %s139
      %p143 = pneg %p137
      %p144 = scmp.eq.s32.totalorder %s18, 3
      %p145 = por %p143, %p144
      %p146 = scmp.ne.s32.totalorder %s138, %s141
      %p147 = scmp.eq.s32.totalorder %s18, 0
      %p148 = por %p146, %p147
      %p149 = scmp.ne.s32.totalorder %s138, %s141
      %p150 = scmp.eq.s32.totalorder %s23, 3
      %p151 = por %p149, %p150
      %p152 = scmp.ne.s32.totalorder %s141, %s142
      %p153 = scmp.eq.s32.totalorder %s23, 0
      %p154 = por %p152, %p153
      %p155 = scmp.ne.s32.totalorder %s141, %s142
      %p156 = scmp.eq.s32.totalorder %s24, 3
      %p157 = por %p155, %p156
      %p159 = scmp.ne.s32.totalorder %s142, %s158
      %p160 = scmp.eq.s32.totalorder %s24, 0
      %p161 = por %p159, %p160
      %p162 = scmp.le.s32.totalorder 1, %s18
      %p163 = scmp.lt.s32.totalorder %s18, 5
      %p164 = pnand %p162, %p163
      %p165 = pneg %p164
      // Predicated region
      $region9: #{tpu_custom_call.1} parent=5 // pred_check
        _
      $region10: #{tpu_custom_call.1} parent=5 // pred_check_branch
        %167 = sbr.rel (%p164) target = $region12
      $region11: #{tpu_custom_call.1} parent=5 // pred_region
        %s168 = ssub.s32 %s18, 1
        // Predicated region
        $region13: #{tpu_custom_call.1} parent=11 // pred_check
          %p169 = pneg %p65
        $region14: #{tpu_custom_call.1} parent=11 // pred_check_branch
          %171 = sbr.rel (%p169) target = $region16
        $region15: #{tpu_custom_call.1} parent=11 // pred_region
          %s173 = ssub.s32 2048, 2048
          %174 = vsyncadd [#allocation7], %s173
          %s175 = sshll.u32 [#allocation6], 4
          %s176 = int_to_ptr.vmem [resolvable:$true] %s175
          %181 = dma.hbm_to_vmem [thread:$0]  %s1, 2048, %s176, [#allocation7], 64, 64, 4
        $region16: #{tpu_custom_call.1} parent=11 // pred_fallthru
          _
        // Predicated region
        $region17: #{tpu_custom_call.1} parent=11 // pred_check
          %p182 = pneg %p86
        $region18: #{tpu_custom_call.1} parent=11 // pred_check_branch
          %184 = sbr.rel (%p182) target = $region20
        $region19: #{tpu_custom_call.1} parent=11 // pred_region
          _
        $region20: #{tpu_custom_call.1} parent=11 // pred_fallthru
          _
        // Predicated region
        $region21: #{tpu_custom_call.1} parent=11 // pred_check
          %p185 = pneg %p107
        $region22: #{tpu_custom_call.1} parent=11 // pred_check_branch
          %187 = sbr.rel (%p185) target = $region24
        $region23: #{tpu_custom_call.1} parent=11 // pred_region
          %s189 = ssub.s32 9216, 9216
          %190 = vsyncadd [#allocation7], %s189
          %s191 = sshll.u32 [#allocation8], 4
          %s192 = int_to_ptr.vmem [resolvable:$true] %s191
          %197 = dma.hbm_to_vmem [thread:$0]  %s3, 9216, %s192, [#allocation7], 64, 64, 4
        $region24: #{tpu_custom_call.1} parent=11 // pred_fallthru
          _
        // Predicated region
        $region25: #{tpu_custom_call.1} parent=11 // pred_check
          %p198 = pneg %p128
        $region26: #{tpu_custom_call.1} parent=11 // pred_check_branch
          %200 = sbr.rel (%p198) target = $region28
        $region27: #{tpu_custom_call.1} parent=11 // pred_region
          _
        $region28: #{tpu_custom_call.1} parent=11 // pred_fallthru
          _
      $region12: #{tpu_custom_call.1} parent=5 // pred_fallthru
        _
      %p201 = scmp.lt.s32.totalorder %s18, 4
      // Predicated region
      $region29: #{tpu_custom_call.1} parent=5 // pred_check
        %p202 = pneg %p201
      $region30: #{tpu_custom_call.1} parent=5 // pred_check_branch
        %204 = sbr.rel (%p202) target = $region32
      $region31: #{tpu_custom_call.1} parent=5 // pred_region
        // Predicated region
        $region33: #{tpu_custom_call.1} parent=31 // pred_check
          %p205 = pneg %p38
        $region34: #{tpu_custom_call.1} parent=31 // pred_check_branch
          %207 = sbr.rel (%p205) target = $region36
        $region35: #{tpu_custom_call.1} parent=31 // pred_region
          %s208 = sand.u32 %s28, 1
          %s209 = scalar_lea.sflag [#allocation4], %s208
          %s210 = sand.u32 %s28, 1
          %s211 = smul.addr %s210, 64
          %s212 = scalar_lea.vmem [#allocation3], %s211
          %s214 = ssub.s32 1024, 1024
          %215 = vsyncadd %s209, %s214
          %s216 = smul.addr %s18, 16
          %s217 = smul.addr %s216, 64
          %s218 = scalar_lea.hbm %s0, %s217
          %s219 = sshll.u32 %s212, 4
          %s220 = int_to_ptr.vmem [resolvable:$true] %s219
          %225 = dma.hbm_to_vmem [thread:$0]  %s218, 1024, %s220, %s209, 128, 128, 8
        $region36: #{tpu_custom_call.1} parent=31 // pred_fallthru
          _
      $region32: #{tpu_custom_call.1} parent=5 // pred_fallthru
        _
      %p226 = scmp.le.s32.totalorder 1, %s18
      %p227 = scmp.lt.s32.totalorder %s18, 5
      %p228 = pnand %p226, %p227
      %p229 = pneg %p228
      // Predicated region
      $region37: #{tpu_custom_call.1} parent=5 // pred_check
        _
      $region38: #{tpu_custom_call.1} parent=5 // pred_check_branch
        %231 = sbr.rel (%p228) target = $region40
      $region39: #{tpu_custom_call.1} parent=5 // pred_region
        %s232 = ssub.s32 %s18, 1
        %s233 = sand.u32 %s31, 1
        %s234 = scalar_lea.sflag [#allocation4], %s233
        %s235 = sand.u32 %s31, 1
        %s236 = smul.addr %s235, 64
        %s237 = scalar_lea.vmem [#allocation3], %s236
        // Predicated region
        $region41: #{tpu_custom_call.1} parent=39 // pred_check
          %p238 = pneg %p44
        $region42: #{tpu_custom_call.1} parent=39 // pred_check_branch
          %240 = sbr.rel (%p238) target = $region44
        $region43: #{tpu_custom_call.1} parent=39 // pred_region
          %241 = dma.done %s234, 1024
        $region44: #{tpu_custom_call.1} parent=39 // pred_fallthru
          _
        // Predicated region
        $region45: #{tpu_custom_call.1} parent=39 // pred_check
          %p242 = pneg %p65
        $region46: #{tpu_custom_call.1} parent=39 // pred_check_branch
          %244 = sbr.rel (%p242) target = $region48
        $region47: #{tpu_custom_call.1} parent=39 // pred_region
          %245 = dma.done [#allocation7], 2048
        $region48: #{tpu_custom_call.1} parent=39 // pred_fallthru
          _
        // Predicated region
        $region49: #{tpu_custom_call.1} parent=39 // pred_check
          %p246 = pneg %p107
        $region50: #{tpu_custom_call.1} parent=39 // pred_check_branch
          %248 = sbr.rel (%p246) target = $region52
        $region51: #{tpu_custom_call.1} parent=39 // pred_region
          %249 = dma.done [#allocation7], 9216
        $region52: #{tpu_custom_call.1} parent=39 // pred_fallthru
          _
        %s250 = sand.u32 %s31, 1
        %s251 = scalar_lea.sflag [#allocation4], %s250
        %s252 = sand.u32 %s31, 1
        %s253 = smul.addr %s252, 64
        %s254 = scalar_lea.vmem [#allocation3], %s253
        %p255 = pneg %p44
        %p256 = pneg %p41
        %p257 = pneg %p65
        %p258 = pneg %p62
        %p259 = pneg %p86
        %p260 = pneg %p83
        %p261 = pneg %p107
        %p262 = pneg %p104
        %p263 = pneg %p128
        %p264 = pneg %p125
        %p265 = pneg %p154
        %p266 = pneg %p151
        %s267 = sand.u32 %s141, 1
        %s268 = scalar_lea.sflag [#allocation5], %s267
        %s269 = sand.u32 %s141, 1
        %s270 = smul.addr %s269, 32
        %s271 = scalar_lea.vmem [#allocation9], %s270
        %v273 = vld [vmem:[%s237] sm:$0xff]
        %v274 = vld [vmem:[%s237 + $0x8] sm:$0xff]
        %v275 = vld [vmem:[%s237 + $0x10] sm:$0xff]
        %v276 = vld [vmem:[%s237 + $0x18] sm:$0xff]
        %v277 = vld [vmem:[%s237 + $0x20] sm:$0xff]
        %v278 = vld [vmem:[%s237 + $0x28] sm:$0xff]
        %v279 = vld [vmem:[%s237 + $0x30] sm:$0xff]
        %v280 = vld [vmem:[%s237 + $0x38] sm:$0xff]
        %v281 = vld [vmem:[#allocation6] sm:$0xf]
        %v282 = vld [vmem:[#allocation6 + $0x4] sm:$0xf]
        %v283 = vld [vmem:[#allocation6 + $0x8] sm:$0xf]
        %v284 = vld [vmem:[#allocation6 + $0xc] sm:$0xf]
        %v285 = vld [vmem:[#allocation6 + $0x10] sm:$0xf]
        %v286 = vld [vmem:[#allocation6 + $0x14] sm:$0xf]
        %v287 = vld [vmem:[#allocation6 + $0x18] sm:$0xf]
        %v288 = vld [vmem:[#allocation6 + $0x1c] sm:$0xf]
        %v289 = vld [vmem:[#allocation6 + $0x20] sm:$0xf]
        %v290 = vld [vmem:[#allocation6 + $0x24] sm:$0xf]
        %v291 = vld [vmem:[#allocation6 + $0x28] sm:$0xf]
        %v292 = vld [vmem:[#allocation6 + $0x2c] sm:$0xf]
        %v293 = vld [vmem:[#allocation6 + $0x30] sm:$0xf]
        %v294 = vld [vmem:[#allocation6 + $0x34] sm:$0xf]
        %v295 = vld [vmem:[#allocation6 + $0x38] sm:$0xf]
        %v296 = vld [vmem:[#allocation6 + $0x3c] sm:$0xf]
        %v297 = vld [vmem:[#allocation6 + $0x40] sm:$0xf]
        %v298 = vld [vmem:[#allocation6 + $0x44] sm:$0xf]
        %v299 = vld [vmem:[#allocation6 + $0x48] sm:$0xf]
        %v300 = vld [vmem:[#allocation6 + $0x4c] sm:$0xf]
        %v301 = vld [vmem:[#allocation6 + $0x50] sm:$0xf]
        %v302 = vld [vmem:[#allocation6 + $0x54] sm:$0xf]
        %v303 = vld [vmem:[#allocation6 + $0x58] sm:$0xf]
        %v304 = vld [vmem:[#allocation6 + $0x5c] sm:$0xf]
        %v305 = vld [vmem:[#allocation6 + $0x60] sm:$0xf]
        %v306 = vld [vmem:[#allocation6 + $0x64] sm:$0xf]
        %v307 = vld [vmem:[#allocation6 + $0x68] sm:$0xf]
        %v308 = vld [vmem:[#allocation6 + $0x6c] sm:$0xf]
        %v309 = vld [vmem:[#allocation6 + $0x70] sm:$0xf]
        %v310 = vld [vmem:[#allocation6 + $0x74] sm:$0xf]
        %v311 = vld [vmem:[#allocation6 + $0x78] sm:$0xf]
        %v312 = vld [vmem:[#allocation6 + $0x7c] sm:$0xf]
        %v313 = vld [vmem:[%s2] sm:$0x1]
        %v315 = vlaneseq
        %v316 = vshrl.u32 %v315, 7
        %v317 = vsub.s32 0, %v316
        %v318 = vrot.slane %v313, %v317
        %v328 = vunpack.c.l.b16 %v273
        %v329 = vunpack.c.h.b16 %v273
        %v330 = vunpack.c.l.b16 %v274
        %v331 = vunpack.c.h.b16 %v274
        %v332 = vunpack.c.l.b16 %v275
        %v333 = vunpack.c.h.b16 %v275
        %v334 = vunpack.c.l.b16 %v276
        %v335 = vunpack.c.h.b16 %v276
        %v336 = vunpack.c.l.b16 %v277
        %v337 = vunpack.c.h.b16 %v277
        %v338 = vunpack.c.l.b16 %v278
        %v339 = vunpack.c.h.b16 %v278
        %v340 = vunpack.c.l.b16 %v279
        %v341 = vunpack.c.h.b16 %v279
        %v342 = vunpack.c.l.b16 %v280
        %v343 = vunpack.c.h.b16 %v280
        %v344 = vpack.c.b16 %v330, %v328
        %v345 = vpack.c.b16 %v331, %v329
        %v346 = vpack.c.b16 %v334, %v332
        %v347 = vpack.c.b16 %v335, %v333
        %v348 = vpack.c.b16 %v338, %v336
        %v349 = vpack.c.b16 %v339, %v337
        %v350 = vpack.c.b16 %v342, %v340
        %v351 = vpack.c.b16 %v343, %v341
        %v392 = vunpack.c.l.b16 %v281
        %v393 = vunpack.c.l.b16 %v282
        %v394 = vunpack.c.l.b16 %v283
        %v395 = vunpack.c.l.b16 %v284
        %v396 = vunpack.c.l.b16 %v285
        %v397 = vunpack.c.l.b16 %v286
        %v398 = vunpack.c.l.b16 %v287
        %v399 = vunpack.c.l.b16 %v288
        %v400 = vunpack.c.l.b16 %v289
        %v401 = vunpack.c.l.b16 %v290
        %v402 = vunpack.c.l.b16 %v291
        %v403 = vunpack.c.l.b16 %v292
        %v404 = vunpack.c.l.b16 %v293
        %v405 = vunpack.c.l.b16 %v294
        %v406 = vunpack.c.l.b16 %v295
        %v407 = vunpack.c.l.b16 %v296
        %v408 = vunpack.c.l.b16 %v297
        %v409 = vunpack.c.l.b16 %v298
        %v410 = vunpack.c.l.b16 %v299
        %v411 = vunpack.c.l.b16 %v300
        %v412 = vunpack.c.l.b16 %v301
        %v413 = vunpack.c.l.b16 %v302
        %v414 = vunpack.c.l.b16 %v303
        %v415 = vunpack.c.l.b16 %v304
        %v416 = vunpack.c.l.b16 %v305
        %v417 = vunpack.c.l.b16 %v306
        %v418 = vunpack.c.l.b16 %v307
        %v419 = vunpack.c.l.b16 %v308
        %v420 = vunpack.c.l.b16 %v309
        %v421 = vunpack.c.l.b16 %v310
        %v422 = vunpack.c.l.b16 %v311
        %v423 = vunpack.c.l.b16 %v312
        %v424 = vpack.c.b16 %v393, %v392
        %v425 = vpack.c.b16 %v395, %v394
        %v426 = vpack.c.b16 %v397, %v396
        %v427 = vpack.c.b16 %v399, %v398
        %v428 = vpack.c.b16 %v401, %v400
        %v429 = vpack.c.b16 %v403, %v402
        %v430 = vpack.c.b16 %v405, %v404
        %v431 = vpack.c.b16 %v407, %v406
        %v432 = vpack.c.b16 %v409, %v408
        %v433 = vpack.c.b16 %v411, %v410
        %v434 = vpack.c.b16 %v413, %v412
        %v435 = vpack.c.b16 %v415, %v414
        %v436 = vpack.c.b16 %v417, %v416
        %v437 = vpack.c.b16 %v419, %v418
        %v438 = vpack.c.b16 %v421, %v420
        %v439 = vpack.c.b16 %v423, %v422
        %456 = vmatprep.subr.bf16.mxu0 0
        %457 = vmatpush1.bf16.msra.mxu0 %v431
        %458 = vmatprep.subr.bf16.mxu0 0
        %459 = vmatpush1.bf16.msra.mxu0 %v430
        %460 = vmatprep.subr.bf16.mxu0 0
        %461 = vmatpush1.bf16.msra.mxu0 %v429
        %462 = vmatprep.subr.bf16.mxu0 0
        %463 = vmatpush1.bf16.msra.mxu0 %v428
        %464 = vmatprep.subr.bf16.mxu0 0
        %465 = vmatpush1.bf16.msra.mxu0 %v427
        %466 = vmatprep.subr.bf16.mxu0 0
        %467 = vmatpush1.bf16.msra.mxu0 %v426
        %468 = vmatprep.subr.bf16.mxu0 0
        %469 = vmatpush1.bf16.msra.mxu0 %v425
        %470 = vmatprep.subr.bf16.mxu0 0
        %471 = vmatpush1.bf16.msra.mxu0 %v424
        %472 = vmatprep.subr.bf16.mxu0 0
        %473 = vmatpush2.bf16.msra.mxu0 %v439
        %474 = vmatprep.subr.bf16.mxu0 0
        %475 = vmatpush2.bf16.msra.mxu0 %v438
        %476 = vmatprep.subr.bf16.mxu0 0
        %477 = vmatpush2.bf16.msra.mxu0 %v437
        %478 = vmatprep.subr.bf16.mxu0 0
        %479 = vmatpush2.bf16.msra.mxu0 %v436
        %480 = vmatprep.subr.bf16.mxu0 0
        %481 = vmatpush2.bf16.msra.mxu0 %v435
        %482 = vmatprep.subr.bf16.mxu0 0
        %483 = vmatpush2.bf16.msra.mxu0 %v434
        %484 = vmatprep.subr.bf16.mxu0 0
        %485 = vmatpush2.bf16.msra.mxu0 %v433
        %486 = vmatprep.subr.bf16.mxu0 0
        %487 = vmatpush2.bf16.msra.mxu0 %v432
        %488 = vmatprep.mubr.bf16.mxu0 %v345
        %489 = vmatmul.mubr.bf16.gmra.mxu0 %v344
        %v490 = vpop.f32.mrf.mxu0
        %v491 = vadd.f32 %v318, %v490
        %v492 = vpop.f32.mrf.mxu0
        %v493 = vpop.f32.mrf.mxu0
        %v494 = vadd.f32 %v318, %v493
        %v495 = vpop.f32.mrf.mxu0
        %496 = vmatprep.mubr.bf16.mxu0 %v347
        %497 = vmatmul.mubr.bf16.gmra.mxu0 %v346
        %v498 = vpop.f32.mrf.mxu0
        %v499 = vadd.f32 %v318, %v498
        %v500 = vpop.f32.mrf.mxu0
        %v501 = vpop.f32.mrf.mxu0
        %v502 = vadd.f32 %v318, %v501
        %v503 = vpop.f32.mrf.mxu0
        %504 = vmatprep.mubr.bf16.mxu0 %v349
        %505 = vmatmul.mubr.bf16.gmra.mxu0 %v348
        %v506 = vpop.f32.mrf.mxu0
        %v507 = vadd.f32 %v318, %v506
        %v508 = vpop.f32.mrf.mxu0
        %v509 = vpop.f32.mrf.mxu0
        %v510 = vadd.f32 %v318, %v509
        %v511 = vpop.f32.mrf.mxu0
        %512 = vmatprep.mubr.bf16.mxu0 %v351
        %513 = vmatmul.mubr.bf16.gmra.mxu0 %v350
        %v514 = vpop.f32.mrf.mxu0
        %v515 = vadd.f32 %v318, %v514
        %v516 = vpop.f32.mrf.mxu0
        %v517 = vpop.f32.mrf.mxu0
        %v518 = vadd.f32 %v318, %v517
        %v519 = vpop.f32.mrf.mxu0
        %520 = vdwg.mxu0
        %v521 = vmax.f32 %v491, 0.0
        %v522 = vmax.f32 %v494, 0.0
        %v523 = vmax.f32 %v499, 0.0
        %v524 = vmax.f32 %v502, 0.0
        %v525 = vmax.f32 %v507, 0.0
        %v526 = vmax.f32 %v510, 0.0
        %v527 = vmax.f32 %v515, 0.0
        %v528 = vmax.f32 %v518, 0.0
        %v529 = vpack.c.bf16 %v521, %v521
        %v530 = vpack.c.bf16 %v522, %v522
        %v531 = vpack.c.bf16 %v523, %v523
        %v532 = vpack.c.bf16 %v524, %v524
        %v533 = vpack.c.bf16 %v525, %v525
        %v534 = vpack.c.bf16 %v526, %v526
        %v535 = vpack.c.bf16 %v527, %v527
        %v536 = vpack.c.bf16 %v528, %v528
        %537 = vst [vmem:[#allocation2] sm:$0xf] 0
        %538 = vst [vmem:[#allocation2 + $0x4] sm:$0xf] 0
        %539 = vst [vmem:[#allocation2 + $0x8] sm:$0xf] 0
        %540 = vst [vmem:[#allocation2 + $0xc] sm:$0xf] 0
        %541 = vst [vmem:[#allocation2 + $0x10] sm:$0xf] 0
        %542 = vst [vmem:[#allocation2 + $0x14] sm:$0xf] 0
        %543 = vst [vmem:[#allocation2 + $0x18] sm:$0xf] 0
        %544 = vst [vmem:[#allocation2 + $0x1c] sm:$0xf] 0
        %545 = vst [vmem:[#allocation2 + $0x20] sm:$0xf] 0
        %546 = vst [vmem:[#allocation2 + $0x24] sm:$0xf] 0
        %547 = vst [vmem:[#allocation2 + $0x28] sm:$0xf] 0
        %548 = vst [vmem:[#allocation2 + $0x2c] sm:$0xf] 0
        %549 = vst [vmem:[#allocation2 + $0x30] sm:$0xf] 0
        %550 = vst [vmem:[#allocation2 + $0x34] sm:$0xf] 0
        %551 = vst [vmem:[#allocation2 + $0x38] sm:$0xf] 0
        %552 = vst [vmem:[#allocation2 + $0x3c] sm:$0xf] 0
        %553 = vst [vmem:[#allocation2 + $0x40] sm:$0xf] 0
        %554 = vst [vmem:[#allocation2 + $0x44] sm:$0xf] 0
        %555 = vst [vmem:[#allocation2 + $0x48] sm:$0xf] 0
        %556 = vst [vmem:[#allocation2 + $0x4c] sm:$0xf] 0
        %557 = vst [vmem:[#allocation2 + $0x50] sm:$0xf] 0
        %558 = vst [vmem:[#allocation2 + $0x54] sm:$0xf] 0
        %v560 = vunpack.c.l.b16 %v529
        %v561 = vpack.c.b16 %v560, %v560
        %v563 = vshrl.u32 %v561, 16
        %v565 = vrot.slane %v563, 7
        %v566 = vshll.u32 %v561, 16
        %v568 = vor.u32 %v565, %v566
        %v569 = vrot.slane %v565, 4
        %vm572 = vcmask 1043456
        %vm573 = vsmask.f32 7938
        %vm574 = vmand %vm572, %vm573
        %v575 = vld [vmem:[#allocation2 + $0x8] sm:$0xf]
        %v576 = vsel %vm574, %v568, %v575
        %577 = vst [vmem:[#allocation2 + $0x8] sm:$0xf] %v576
        %vm578 = vcmask 1040384
        %vm579 = vsmask.f32 256
        %vm580 = vmand %vm578, %vm579
        %v581 = vld [vmem:[#allocation2 + $0xc] sm:$0x1]
        %v582 = vsel %vm580, %v569, %v581
        %583 = vst [vmem:[#allocation2 + $0xc] sm:$0x1] %v582
        %v585 = vunpack.c.l.b16 %v530
        %v586 = vpack.c.b16 %v585, %v585
        %v588 = vshrl.u32 %v586, 16
        %v590 = vrot.slane %v588, 7
        %v591 = vshll.u32 %v586, 16
        %v593 = vor.u32 %v590, %v591
        %v594 = vrot.slane %v590, 4
        %v597 = vld [vmem:[#allocation2 + $0x10] sm:$0xf]
        %v598 = vsel %vm574, %v593, %v597
        %599 = vst [vmem:[#allocation2 + $0x10] sm:$0xf] %v598
        %v600 = vld [vmem:[#allocation2 + $0x14] sm:$0x1]
        %v601 = vsel %vm580, %v594, %v600
        %602 = vst [vmem:[#allocation2 + $0x14] sm:$0x1] %v601
        %v604 = vunpack.c.l.b16 %v531
        %v605 = vpack.c.b16 %v604, %v604
        %v607 = vshrl.u32 %v605, 16
        %v609 = vrot.slane %v607, 7
        %v610 = vshll.u32 %v605, 16
        %v612 = vor.u32 %v609, %v610
        %v613 = vrot.slane %v609, 4
        %v616 = vld [vmem:[#allocation2 + $0x18] sm:$0xf]
        %v617 = vsel %vm574, %v612, %v616
        %618 = vst [vmem:[#allocation2 + $0x18] sm:$0xf] %v617
        %v619 = vld [vmem:[#allocation2 + $0x1c] sm:$0x1]
        %v620 = vsel %vm580, %v613, %v619
        %621 = vst [vmem:[#allocation2 + $0x1c] sm:$0x1] %v620
        %v623 = vunpack.c.l.b16 %v532
        %v624 = vpack.c.b16 %v623, %v623
        %v626 = vshrl.u32 %v624, 16
        %v628 = vrot.slane %v626, 7
        %v629 = vshll.u32 %v624, 16
        %v631 = vor.u32 %v628, %v629
        %v632 = vrot.slane %v628, 4
        %v635 = vld [vmem:[#allocation2 + $0x20] sm:$0xf]
        %v636 = vsel %vm574, %v631, %v635
        %637 = vst [vmem:[#allocation2 + $0x20] sm:$0xf] %v636
        %v638 = vld [vmem:[#allocation2 + $0x24] sm:$0x1]
        %v639 = vsel %vm580, %v632, %v638
        %640 = vst [vmem:[#allocation2 + $0x24] sm:$0x1] %v639
        %v642 = vunpack.c.l.b16 %v533
        %v643 = vpack.c.b16 %v642, %v642
        %v645 = vshrl.u32 %v643, 16
        %v647 = vrot.slane %v645, 7
        %v648 = vshll.u32 %v643, 16
        %v650 = vor.u32 %v647, %v648
        %v651 = vrot.slane %v647, 4
        %v654 = vld [vmem:[#allocation2 + $0x28] sm:$0xf]
        %v655 = vsel %vm574, %v650, %v654
        %656 = vst [vmem:[#allocation2 + $0x28] sm:$0xf] %v655
        %v657 = vld [vmem:[#allocation2 + $0x2c] sm:$0x1]
        %v658 = vsel %vm580, %v651, %v657
        %659 = vst [vmem:[#allocation2 + $0x2c] sm:$0x1] %v658
        %v661 = vunpack.c.l.b16 %v534
        %v662 = vpack.c.b16 %v661, %v661
        %v664 = vshrl.u32 %v662, 16
        %v666 = vrot.slane %v664, 7
        %v667 = vshll.u32 %v662, 16
        %v669 = vor.u32 %v666, %v667
        %v670 = vrot.slane %v666, 4
        %v673 = vld [vmem:[#allocation2 + $0x30] sm:$0xf]
        %v674 = vsel %vm574, %v669, %v673
        %675 = vst [vmem:[#allocation2 + $0x30] sm:$0xf] %v674
        %v676 = vld [vmem:[#allocation2 + $0x34] sm:$0x1]
        %v677 = vsel %vm580, %v670, %v676
        %678 = vst [vmem:[#allocation2 + $0x34] sm:$0x1] %v677
        %v680 = vunpack.c.l.b16 %v535
        %v681 = vpack.c.b16 %v680, %v680
        %v683 = vshrl.u32 %v681, 16
        %v685 = vrot.slane %v683, 7
        %v686 = vshll.u32 %v681, 16
        %v688 = vor.u32 %v685, %v686
        %v689 = vrot.slane %v685, 4
        %v692 = vld [vmem:[#allocation2 + $0x38] sm:$0xf]
        %v693 = vsel %vm574, %v688, %v692
        %694 = vst [vmem:[#allocation2 + $0x38] sm:$0xf] %v693
        %v695 = vld [vmem:[#allocation2 + $0x3c] sm:$0x1]
        %v696 = vsel %vm580, %v689, %v695
        %697 = vst [vmem:[#allocation2 + $0x3c] sm:$0x1] %v696
        %v699 = vunpack.c.l.b16 %v536
        %v700 = vpack.c.b16 %v699, %v699
        %v702 = vshrl.u32 %v700, 16
        %v704 = vrot.slane %v702, 7
        %v705 = vshll.u32 %v700, 16
        %v707 = vor.u32 %v704, %v705
        %v708 = vrot.slane %v704, 4
        %v711 = vld [vmem:[#allocation2 + $0x40] sm:$0xf]
        %v712 = vsel %vm574, %v707, %v711
        %713 = vst [vmem:[#allocation2 + $0x40] sm:$0xf] %v712
        %v714 = vld [vmem:[#allocation2 + $0x44] sm:$0x1]
        %v715 = vsel %vm580, %v708, %v714
        %716 = vst [vmem:[#allocation2 + $0x44] sm:$0x1] %v715
        %v717 = vld [vmem:[#allocation2] sm:$0xf]
        %v718 = vld [vmem:[#allocation2 + $0x4] sm:$0xf]
        %v719 = vld [vmem:[#allocation2 + $0x8] sm:$0xf]
        %v720 = vld [vmem:[#allocation2 + $0xc] sm:$0xf]
        %v721 = vld [vmem:[#allocation2 + $0x10] sm:$0xf]
        %v722 = vld [vmem:[#allocation2 + $0x14] sm:$0xf]
        %v723 = vld [vmem:[#allocation2 + $0x18] sm:$0xf]
        %v724 = vld [vmem:[#allocation2 + $0x1c] sm:$0xf]
        %v725 = vld [vmem:[#allocation2 + $0x20] sm:$0xf]
        %v726 = vld [vmem:[#allocation2 + $0x24] sm:$0xf]
        %v727 = vld [vmem:[#allocation2 + $0x28] sm:$0xf]
        %v728 = vld [vmem:[#allocation2 + $0x2c] sm:$0xf]
        %v729 = vld [vmem:[#allocation2 + $0x30] sm:$0xf]
        %v730 = vld [vmem:[#allocation2 + $0x34] sm:$0xf]
        %v731 = vld [vmem:[#allocation2 + $0x38] sm:$0xf]
        %v732 = vld [vmem:[#allocation2 + $0x3c] sm:$0xf]
        %v733 = vld [vmem:[#allocation8] sm:$0xf]
        %v734 = vld [vmem:[#allocation8 + $0x4] sm:$0xf]
        %v735 = vld [vmem:[#allocation8 + $0x8] sm:$0xf]
        %v736 = vld [vmem:[#allocation8 + $0xc] sm:$0xf]
        %v737 = vld [vmem:[#allocation8 + $0x10] sm:$0xf]
        %v738 = vld [vmem:[#allocation8 + $0x14] sm:$0xf]
        %v739 = vld [vmem:[#allocation8 + $0x18] sm:$0xf]
        %v740 = vld [vmem:[#allocation8 + $0x1c] sm:$0xf]
        %v741 = vld [vmem:[#allocation8 + $0x20] sm:$0xf]
        %v742 = vld [vmem:[#allocation8 + $0x24] sm:$0xf]
        %v743 = vld [vmem:[#allocation8 + $0x28] sm:$0xf]
        %v744 = vld [vmem:[#allocation8 + $0x2c] sm:$0xf]
        %v745 = vld [vmem:[#allocation8 + $0x30] sm:$0xf]
        %v746 = vld [vmem:[#allocation8 + $0x34] sm:$0xf]
        %v747 = vld [vmem:[#allocation8 + $0x38] sm:$0xf]
        %v748 = vld [vmem:[#allocation8 + $0x3c] sm:$0xf]
        %v749 = vld [vmem:[#allocation2 + $0x40] sm:$0x1]
        %v750 = vld [vmem:[#allocation8 + $0x40] sm:$0xf]
        %v751 = vld [vmem:[#allocation8 + $0x44] sm:$0xf]
        %v752 = vld [vmem:[#allocation8 + $0x48] sm:$0xf]
        %v753 = vld [vmem:[#allocation8 + $0x4c] sm:$0xf]
        %v754 = vld [vmem:[#allocation8 + $0x50] sm:$0xf]
        %v755 = vld [vmem:[#allocation8 + $0x54] sm:$0xf]
        %v756 = vld [vmem:[#allocation8 + $0x58] sm:$0xf]
        %v757 = vld [vmem:[#allocation8 + $0x5c] sm:$0xf]
        %v758 = vld [vmem:[#allocation8 + $0x60] sm:$0xf]
        %v759 = vld [vmem:[#allocation8 + $0x64] sm:$0xf]
        %v760 = vld [vmem:[#allocation8 + $0x68] sm:$0xf]
        %v761 = vld [vmem:[#allocation8 + $0x6c] sm:$0xf]
        %v762 = vld [vmem:[#allocation8 + $0x70] sm:$0xf]
        %v763 = vld [vmem:[#allocation8 + $0x74] sm:$0xf]
        %v764 = vld [vmem:[#allocation8 + $0x78] sm:$0xf]
        %v765 = vld [vmem:[#allocation8 + $0x7c] sm:$0xf]
        %v783 = vunpack.c.l.b16 %v717
        %v784 = vunpack.c.l.b16 %v718
        %v785 = vunpack.c.l.b16 %v719
        %v786 = vunpack.c.l.b16 %v720
        %v787 = vunpack.c.l.b16 %v721
        %v788 = vunpack.c.l.b16 %v722
        %v789 = vunpack.c.l.b16 %v723
        %v790 = vunpack.c.l.b16 %v724
        %v791 = vunpack.c.l.b16 %v725
        %v792 = vunpack.c.l.b16 %v726
        %v793 = vunpack.c.l.b16 %v727
        %v794 = vunpack.c.l.b16 %v728
        %v795 = vunpack.c.l.b16 %v729
        %v796 = vunpack.c.l.b16 %v730
        %v797 = vunpack.c.l.b16 %v731
        %v798 = vunpack.c.l.b16 %v732
        %v799 = vunpack.c.l.b16 %v749
        %v800 = vpack.c.b16 %v784, %v783
        %v801 = vpack.c.b16 %v786, %v785
        %v802 = vpack.c.b16 %v788, %v787
        %v803 = vpack.c.b16 %v790, %v789
        %v804 = vpack.c.b16 %v792, %v791
        %v805 = vpack.c.b16 %v794, %v793
        %v806 = vpack.c.b16 %v796, %v795
        %v807 = vpack.c.b16 %v798, %v797
        %v808 = vpack.c.b16 %v799, %v799
        %vm809 = vsmask.f32 7424
        %v811 = vshrl.u32 %v800, 16
        %v813 = vshll.u32 %v800, 16
        %v815 = vrot.slane %v813, 1
        %v816 = vor.u32 %v811, %v815
        %v818 = vshll.u32 %v801, 16
        %v820 = vrot.slane %v818, 1
        %v821 = vsel %vm809, %v816, %v820
        %v822 = vshrl.u32 %v801, 16
        %v824 = vor.u32 %v822, %v820
        %v826 = vshll.u32 %v802, 16
        %v828 = vrot.slane %v826, 1
        %v829 = vsel %vm809, %v824, %v828
        %v830 = vshrl.u32 %v802, 16
        %v832 = vor.u32 %v830, %v828
        %v834 = vshll.u32 %v803, 16
        %v836 = vrot.slane %v834, 1
        %v837 = vsel %vm809, %v832, %v836
        %v838 = vshrl.u32 %v803, 16
        %v840 = vor.u32 %v838, %v836
        %v842 = vshll.u32 %v804, 16
        %v844 = vrot.slane %v842, 1
        %v845 = vsel %vm809, %v840, %v844
        %v846 = vshrl.u32 %v804, 16
        %v848 = vor.u32 %v846, %v844
        %v850 = vshll.u32 %v805, 16
        %v852 = vrot.slane %v850, 1
        %v853 = vsel %vm809, %v848, %v852
        %v854 = vshrl.u32 %v805, 16
        %v856 = vor.u32 %v854, %v852
        %v858 = vshll.u32 %v806, 16
        %v860 = vrot.slane %v858, 1
        %v861 = vsel %vm809, %v856, %v860
        %v862 = vshrl.u32 %v806, 16
        %v864 = vor.u32 %v862, %v860
        %v866 = vshll.u32 %v807, 16
        %v868 = vrot.slane %v866, 1
        %v869 = vsel %vm809, %v864, %v868
        %v870 = vshrl.u32 %v807, 16
        %v872 = vor.u32 %v870, %v868
        %v874 = vshll.u32 %v808, 16
        %v876 = vrot.slane %v874, 1
        %v877 = vsel %vm809, %v872, %v876
        %v902 = vunpack.c.l.b16 %v750
        %v903 = vunpack.c.l.b16 %v751
        %v904 = vunpack.c.l.b16 %v752
        %v905 = vunpack.c.l.b16 %v753
        %v906 = vunpack.c.l.b16 %v754
        %v907 = vunpack.c.l.b16 %v755
        %v908 = vunpack.c.l.b16 %v756
        %v909 = vunpack.c.l.b16 %v757
        %v910 = vunpack.c.l.b16 %v758
        %v911 = vunpack.c.l.b16 %v759
        %v912 = vunpack.c.l.b16 %v760
        %v913 = vunpack.c.l.b16 %v761
        %v914 = vunpack.c.l.b16 %v762
        %v915 = vunpack.c.l.b16 %v763
        %v916 = vunpack.c.l.b16 %v764
        %v917 = vunpack.c.l.b16 %v765
        %v918 = vpack.c.b16 %v903, %v902
        %v919 = vpack.c.b16 %v905, %v904
        %v920 = vpack.c.b16 %v907, %v906
        %v921 = vpack.c.b16 %v909, %v908
        %v922 = vpack.c.b16 %v911, %v910
        %v923 = vpack.c.b16 %v913, %v912
        %v924 = vpack.c.b16 %v915, %v914
        %v925 = vpack.c.b16 %v917, %v916
        %934 = vmatprep.subr.bf16.mxu0 0
        %935 = vmatpush1.bf16.msra.mxu0 %v925
        %936 = vmatprep.subr.bf16.mxu0 0
        %937 = vmatpush1.bf16.msra.mxu0 %v924
        %938 = vmatprep.subr.bf16.mxu0 0
        %939 = vmatpush1.bf16.msra.mxu0 %v923
        %940 = vmatprep.subr.bf16.mxu0 0
        %941 = vmatpush1.bf16.msra.mxu0 %v922
        %942 = vmatprep.subr.bf16.mxu0 0
        %943 = vmatpush1.bf16.msra.mxu0 %v921
        %944 = vmatprep.subr.bf16.mxu0 0
        %945 = vmatpush1.bf16.msra.mxu0 %v920
        %946 = vmatprep.subr.bf16.mxu0 0
        %947 = vmatpush1.bf16.msra.mxu0 %v919
        %948 = vmatprep.subr.bf16.mxu0 0
        %949 = vmatpush1.bf16.msra.mxu0 %v918
        %950 = vmatprep.subr.bf16.mxu0 0
        %951 = vmatpush2.bf16.msra.mxu0 0
        %952 = vmatprep.subr.bf16.mxu0 0
        %953 = vmatpush2.bf16.msra.mxu0 0
        %954 = vmatprep.subr.bf16.mxu0 0
        %955 = vmatpush2.bf16.msra.mxu0 0
        %956 = vmatprep.subr.bf16.mxu0 0
        %957 = vmatpush2.bf16.msra.mxu0 0
        %958 = vmatprep.subr.bf16.mxu0 0
        %959 = vmatpush2.bf16.msra.mxu0 0
        %960 = vmatprep.subr.bf16.mxu0 0
        %961 = vmatpush2.bf16.msra.mxu0 0
        %962 = vmatprep.subr.bf16.mxu0 0
        %963 = vmatpush2.bf16.msra.mxu0 0
        %964 = vmatprep.subr.bf16.mxu0 0
        %965 = vmatpush2.bf16.msra.mxu0 0
        %966 = vmatprep.mubr.bf16.mxu0 0
        %967 = vmatmul.mubr.bf16.gmra.mxu0 %v821
        %v968 = vpop.f32.mrf.mxu0
        %v969 = vadd.f32 0.0, %v968
        %v970 = vpop.f32.mrf.mxu0
        %v971 = vpop.f32.mrf.mxu0
        %v972 = vpop.f32.mrf.mxu0
        %973 = vmatprep.mubr.bf16.mxu0 0
        %974 = vmatmul.mubr.bf16.gmra.mxu0 %v829
        %v975 = vpop.f32.mrf.mxu0
        %v976 = vadd.f32 0.0, %v975
        %v977 = vpop.f32.mrf.mxu0
        %v978 = vpop.f32.mrf.mxu0
        %v979 = vpop.f32.mrf.mxu0
        %980 = vmatprep.mubr.bf16.mxu0 0
        %981 = vmatmul.mubr.bf16.gmra.mxu0 %v837
        %v982 = vpop.f32.mrf.mxu0
        %v983 = vadd.f32 0.0, %v982
        %v984 = vpop.f32.mrf.mxu0
        %v985 = vpop.f32.mrf.mxu0
        %v986 = vpop.f32.mrf.mxu0
        %987 = vmatprep.mubr.bf16.mxu0 0
        %988 = vmatmul.mubr.bf16.gmra.mxu0 %v845
        %v989 = vpop.f32.mrf.mxu0
        %v990 = vadd.f32 0.0, %v989
        %v991 = vpop.f32.mrf.mxu0
        %v992 = vpop.f32.mrf.mxu0
        %v993 = vpop.f32.mrf.mxu0
        %994 = vmatprep.mubr.bf16.mxu0 0
        %995 = vmatmul.mubr.bf16.gmra.mxu0 %v853
        %v996 = vpop.f32.mrf.mxu0
        %v997 = vadd.f32 0.0, %v996
        %v998 = vpop.f32.mrf.mxu0
        %v999 = vpop.f32.mrf.mxu0
        %v1000 = vpop.f32.mrf.mxu0
        %1001 = vmatprep.mubr.bf16.mxu0 0
        %1002 = vmatmul.mubr.bf16.gmra.mxu0 %v861
        %v1003 = vpop.f32.mrf.mxu0
        %v1004 = vadd.f32 0.0, %v1003
        %v1005 = vpop.f32.mrf.mxu0
        %v1006 = vpop.f32.mrf.mxu0
        %v1007 = vpop.f32.mrf.mxu0
        %1008 = vmatprep.mubr.bf16.mxu0 0
        %1009 = vmatmul.mubr.bf16.gmra.mxu0 %v869
        %v1010 = vpop.f32.mrf.mxu0
        %v1011 = vadd.f32 0.0, %v1010
        %v1012 = vpop.f32.mrf.mxu0
        %v1013 = vpop.f32.mrf.mxu0
        %v1014 = vpop.f32.mrf.mxu0
        %1015 = vmatprep.mubr.bf16.mxu0 0
        %1016 = vmatmul.mubr.bf16.gmra.mxu0 %v877
        %v1017 = vpop.f32.mrf.mxu0
        %v1018 = vadd.f32 0.0, %v1017
        %v1019 = vpop.f32.mrf.mxu0
        %v1020 = vpop.f32.mrf.mxu0
        %v1021 = vpop.f32.mrf.mxu0
        %1022 = vdwg.mxu0
        %v1047 = vunpack.c.l.b16 %v733
        %v1048 = vunpack.c.l.b16 %v734
        %v1049 = vunpack.c.l.b16 %v735
        %v1050 = vunpack.c.l.b16 %v736
        %v1051 = vunpack.c.l.b16 %v737
        %v1052 = vunpack.c.l.b16 %v738
        %v1053 = vunpack.c.l.b16 %v739
        %v1054 = vunpack.c.l.b16 %v740
        %v1055 = vunpack.c.l.b16 %v741
        %v1056 = vunpack.c.l.b16 %v742
        %v1057 = vunpack.c.l.b16 %v743
        %v1058 = vunpack.c.l.b16 %v744
        %v1059 = vunpack.c.l.b16 %v745
        %v1060 = vunpack.c.l.b16 %v746
        %v1061 = vunpack.c.l.b16 %v747
        %v1062 = vunpack.c.l.b16 %v748
        %v1063 = vpack.c.b16 %v1048, %v1047
        %v1064 = vpack.c.b16 %v1050, %v1049
        %v1065 = vpack.c.b16 %v1052, %v1051
        %v1066 = vpack.c.b16 %v1054, %v1053
        %v1067 = vpack.c.b16 %v1056, %v1055
        %v1068 = vpack.c.b16 %v1058, %v1057
        %v1069 = vpack.c.b16 %v1060, %v1059
        %v1070 = vpack.c.b16 %v1062, %v1061
        %1079 = vmatprep.subr.bf16.mxu0 0
        %1080 = vmatpush1.bf16.msra.mxu0 %v1070
        %1081 = vmatprep.subr.bf16.mxu0 0
        %1082 = vmatpush1.bf16.msra.mxu0 %v1069
        %1083 = vmatprep.subr.bf16.mxu0 0
        %1084 = vmatpush1.bf16.msra.mxu0 %v1068
        %1085 = vmatprep.subr.bf16.mxu0 0
        %1086 = vmatpush1.bf16.msra.mxu0 %v1067
        %1087 = vmatprep.subr.bf16.mxu0 0
        %1088 = vmatpush1.bf16.msra.mxu0 %v1066
        %1089 = vmatprep.subr.bf16.mxu0 0
        %1090 = vmatpush1.bf16.msra.mxu0 %v1065
        %1091 = vmatprep.subr.bf16.mxu0 0
        %1092 = vmatpush1.bf16.msra.mxu0 %v1064
        %1093 = vmatprep.subr.bf16.mxu0 0
        %1094 = vmatpush1.bf16.msra.mxu0 %v1063
        %1095 = vmatprep.subr.bf16.mxu0 0
        %1096 = vmatpush2.bf16.msra.mxu0 0
        %1097 = vmatprep.subr.bf16.mxu0 0
        %1098 = vmatpush2.bf16.msra.mxu0 0
        %1099 = vmatprep.subr.bf16.mxu0 0
        %1100 = vmatpush2.bf16.msra.mxu0 0
        %1101 = vmatprep.subr.bf16.mxu0 0
        %1102 = vmatpush2.bf16.msra.mxu0 0
        %1103 = vmatprep.subr.bf16.mxu0 0
        %1104 = vmatpush2.bf16.msra.mxu0 0
        %1105 = vmatprep.subr.bf16.mxu0 0
        %1106 = vmatpush2.bf16.msra.mxu0 0
        %1107 = vmatprep.subr.bf16.mxu0 0
        %1108 = vmatpush2.bf16.msra.mxu0 0
        %1109 = vmatprep.subr.bf16.mxu0 0
        %1110 = vmatpush2.bf16.msra.mxu0 0
        %1111 = vmatprep.mubr.bf16.mxu0 0
        %1112 = vmatmul.mubr.bf16.gmra.mxu0 %v800
        %v1113 = vpop.f32.mrf.mxu0
        %v1114 = vadd.f32 %v969, %v1113
        %v1115 = vpop.f32.mrf.mxu0
        %v1116 = vpop.f32.mrf.mxu0
        %v1117 = vpop.f32.mrf.mxu0
        %1118 = vmatprep.mubr.bf16.mxu0 0
        %1119 = vmatmul.mubr.bf16.gmra.mxu0 %v801
        %v1120 = vpop.f32.mrf.mxu0
        %v1121 = vadd.f32 %v976, %v1120
        %v1122 = vpop.f32.mrf.mxu0
        %v1123 = vpop.f32.mrf.mxu0
        %v1124 = vpop.f32.mrf.mxu0
        %1125 = vmatprep.mubr.bf16.mxu0 0
        %1126 = vmatmul.mubr.bf16.gmra.mxu0 %v802
        %v1127 = vpop.f32.mrf.mxu0
        %v1128 = vadd.f32 %v983, %v1127
        %v1129 = vpop.f32.mrf.mxu0
        %v1130 = vpop.f32.mrf.mxu0
        %v1131 = vpop.f32.mrf.mxu0
        %1132 = vmatprep.mubr.bf16.mxu0 0
        %1133 = vmatmul.mubr.bf16.gmra.mxu0 %v803
        %v1134 = vpop.f32.mrf.mxu0
        %v1135 = vadd.f32 %v990, %v1134
        %v1136 = vpop.f32.mrf.mxu0
        %v1137 = vpop.f32.mrf.mxu0
        %v1138 = vpop.f32.mrf.mxu0
        %1139 = vmatprep.mubr.bf16.mxu0 0
        %1140 = vmatmul.mubr.bf16.gmra.mxu0 %v804
        %v1141 = vpop.f32.mrf.mxu0
        %v1142 = vadd.f32 %v997, %v1141
        %v1143 = vpop.f32.mrf.mxu0
        %v1144 = vpop.f32.mrf.mxu0
        %v1145 = vpop.f32.mrf.mxu0
        %1146 = vmatprep.mubr.bf16.mxu0 0
        %1147 = vmatmul.mubr.bf16.gmra.mxu0 %v805
        %v1148 = vpop.f32.mrf.mxu0
        %v1149 = vadd.f32 %v1004, %v1148
        %v1150 = vpop.f32.mrf.mxu0
        %v1151 = vpop.f32.mrf.mxu0
        %v1152 = vpop.f32.mrf.mxu0
        %1153 = vmatprep.mubr.bf16.mxu0 0
        %1154 = vmatmul.mubr.bf16.gmra.mxu0 %v806
        %v1155 = vpop.f32.mrf.mxu0
        %v1156 = vadd.f32 %v1011, %v1155
        %v1157 = vpop.f32.mrf.mxu0
        %v1158 = vpop.f32.mrf.mxu0
        %v1159 = vpop.f32.mrf.mxu0
        %1160 = vmatprep.mubr.bf16.mxu0 0
        %1161 = vmatmul.mubr.bf16.gmra.mxu0 %v807
        %v1162 = vpop.f32.mrf.mxu0
        %v1163 = vadd.f32 %v1018, %v1162
        %v1164 = vpop.f32.mrf.mxu0
        %v1165 = vpop.f32.mrf.mxu0
        %v1166 = vpop.f32.mrf.mxu0
        %1167 = vdwg.mxu0
        %v1168 = vld [vmem:[#allocation2] sm:$0xe]
        %v1169 = vld [vmem:[#allocation8 + $0x80] sm:$0xf]
        %v1170 = vld [vmem:[#allocation8 + $0x84] sm:$0xf]
        %v1171 = vld [vmem:[#allocation8 + $0x88] sm:$0xf]
        %v1172 = vld [vmem:[#allocation8 + $0x8c] sm:$0xf]
        %v1173 = vld [vmem:[#allocation8 + $0x90] sm:$0xf]
        %v1174 = vld [vmem:[#allocation8 + $0x94] sm:$0xf]
        %v1175 = vld [vmem:[#allocation8 + $0x98] sm:$0xf]
        %v1176 = vld [vmem:[#allocation8 + $0x9c] sm:$0xf]
        %v1177 = vld [vmem:[#allocation8 + $0xa0] sm:$0xf]
        %v1178 = vld [vmem:[#allocation8 + $0xa4] sm:$0xf]
        %v1179 = vld [vmem:[#allocation8 + $0xa8] sm:$0xf]
        %v1180 = vld [vmem:[#allocation8 + $0xac] sm:$0xf]
        %v1181 = vld [vmem:[#allocation8 + $0xb0] sm:$0xf]
        %v1182 = vld [vmem:[#allocation8 + $0xb4] sm:$0xf]
        %v1183 = vld [vmem:[#allocation8 + $0xb8] sm:$0xf]
        %v1184 = vld [vmem:[#allocation8 + $0xbc] sm:$0xf]
        %v1186 = vunpack.c.l.b16 %v1168
        %v1187 = vpack.c.b16 %v784, %v1186
        %vm1188 = vcmask 1046528
        %v1189 = vrot.slane %v1187, 1
        %v1190 = vrot.slane %v801, 1
        %v1191 = vsel %vm1188, %v1189, %v1190
        %v1192 = vrot.slane %v802, 1
        %v1193 = vsel %vm1188, %v1190, %v1192
        %v1194 = vrot.slane %v803, 1
        %v1195 = vsel %vm1188, %v1192, %v1194
        %v1196 = vrot.slane %v804, 1
        %v1197 = vsel %vm1188, %v1194, %v1196
        %v1198 = vrot.slane %v805, 1
        %v1199 = vsel %vm1188, %v1196, %v1198
        %v1200 = vrot.slane %v806, 1
        %v1201 = vsel %vm1188, %v1198, %v1200
        %v1202 = vrot.slane %v807, 1
        %v1203 = vsel %vm1188, %v1200, %v1202
        %v1204 = vrot.slane %v808, 1
        %v1205 = vsel %vm1188, %v1202, %v1204
        %v1230 = vunpack.c.l.b16 %v1169
        %v1231 = vunpack.c.l.b16 %v1170
        %v1232 = vunpack.c.l.b16 %v1171
        %v1233 = vunpack.c.l.b16 %v1172
        %v1234 = vunpack.c.l.b16 %v1173
        %v1235 = vunpack.c.l.b16 %v1174
        %v1236 = vunpack.c.l.b16 %v1175
        %v1237 = vunpack.c.l.b16 %v1176
        %v1238 = vunpack.c.l.b16 %v1177
        %v1239 = vunpack.c.l.b16 %v1178
        %v1240 = vunpack.c.l.b16 %v1179
        %v1241 = vunpack.c.l.b16 %v1180
        %v1242 = vunpack.c.l.b16 %v1181
        %v1243 = vunpack.c.l.b16 %v1182
        %v1244 = vunpack.c.l.b16 %v1183
        %v1245 = vunpack.c.l.b16 %v1184
        %v1246 = vpack.c.b16 %v1231, %v1230
        %v1247 = vpack.c.b16 %v1233, %v1232
        %v1248 = vpack.c.b16 %v1235, %v1234
        %v1249 = vpack.c.b16 %v1237, %v1236
        %v1250 = vpack.c.b16 %v1239, %v1238
        %v1251 = vpack.c.b16 %v1241, %v1240
        %v1252 = vpack.c.b16 %v1243, %v1242
        %v1253 = vpack.c.b16 %v1245, %v1244
        %1262 = vmatprep.subr.bf16.mxu0 0
        %1263 = vmatpush1.bf16.msra.mxu0 %v1253
        %1264 = vmatprep.subr.bf16.mxu0 0
        %1265 = vmatpush1.bf16.msra.mxu0 %v1252
        %1266 = vmatprep.subr.bf16.mxu0 0
        %1267 = vmatpush1.bf16.msra.mxu0 %v1251
        %1268 = vmatprep.subr.bf16.mxu0 0
        %1269 = vmatpush1.bf16.msra.mxu0 %v1250
        %1270 = vmatprep.subr.bf16.mxu0 0
        %1271 = vmatpush1.bf16.msra.mxu0 %v1249
        %1272 = vmatprep.subr.bf16.mxu0 0
        %1273 = vmatpush1.bf16.msra.mxu0 %v1248
        %1274 = vmatprep.subr.bf16.mxu0 0
        %1275 = vmatpush1.bf16.msra.mxu0 %v1247
        %1276 = vmatprep.subr.bf16.mxu0 0
        %1277 = vmatpush1.bf16.msra.mxu0 %v1246
        %1278 = vmatprep.subr.bf16.mxu0 0
        %1279 = vmatpush2.bf16.msra.mxu0 0
        %1280 = vmatprep.subr.bf16.mxu0 0
        %1281 = vmatpush2.bf16.msra.mxu0 0
        %1282 = vmatprep.subr.bf16.mxu0 0
        %1283 = vmatpush2.bf16.msra.mxu0 0
        %1284 = vmatprep.subr.bf16.mxu0 0
        %1285 = vmatpush2.bf16.msra.mxu0 0
        %1286 = vmatprep.subr.bf16.mxu0 0
        %1287 = vmatpush2.bf16.msra.mxu0 0
        %1288 = vmatprep.subr.bf16.mxu0 0
        %1289 = vmatpush2.bf16.msra.mxu0 0
        %1290 = vmatprep.subr.bf16.mxu0 0
        %1291 = vmatpush2.bf16.msra.mxu0 0
        %1292 = vmatprep.subr.bf16.mxu0 0
        %1293 = vmatpush2.bf16.msra.mxu0 0
        %1294 = vmatprep.mubr.bf16.mxu0 0
        %1295 = vmatmul.mubr.bf16.gmra.mxu0 %v1191
        %v1296 = vpop.f32.mrf.mxu0
        %v1297 = vadd.f32 0.0, %v1296
        %v1298 = vpop.f32.mrf.mxu0
        %v1299 = vpop.f32.mrf.mxu0
        %v1300 = vpop.f32.mrf.mxu0
        %1301 = vmatprep.mubr.bf16.mxu0 0
        %1302 = vmatmul.mubr.bf16.gmra.mxu0 %v1193
        %v1303 = vpop.f32.mrf.mxu0
        %v1304 = vadd.f32 0.0, %v1303
        %v1305 = vpop.f32.mrf.mxu0
        %v1306 = vpop.f32.mrf.mxu0
        %v1307 = vpop.f32.mrf.mxu0
        %1308 = vmatprep.mubr.bf16.mxu0 0
        %1309 = vmatmul.mubr.bf16.gmra.mxu0 %v1195
        %v1310 = vpop.f32.mrf.mxu0
        %v1311 = vadd.f32 0.0, %v1310
        %v1312 = vpop.f32.mrf.mxu0
        %v1313 = vpop.f32.mrf.mxu0
        %v1314 = vpop.f32.mrf.mxu0
        %1315 = vmatprep.mubr.bf16.mxu0 0
        %1316 = vmatmul.mubr.bf16.gmra.mxu0 %v1197
        %v1317 = vpop.f32.mrf.mxu0
        %v1318 = vadd.f32 0.0, %v1317
        %v1319 = vpop.f32.mrf.mxu0
        %v1320 = vpop.f32.mrf.mxu0
        %v1321 = vpop.f32.mrf.mxu0
        %1322 = vmatprep.mubr.bf16.mxu0 0
        %1323 = vmatmul.mubr.bf16.gmra.mxu0 %v1199
        %v1324 = vpop.f32.mrf.mxu0
        %v1325 = vadd.f32 0.0, %v1324
        %v1326 = vpop.f32.mrf.mxu0
        %v1327 = vpop.f32.mrf.mxu0
        %v1328 = vpop.f32.mrf.mxu0
        %1329 = vmatprep.mubr.bf16.mxu0 0
        %1330 = vmatmul.mubr.bf16.gmra.mxu0 %v1201
        %v1331 = vpop.f32.mrf.mxu0
        %v1332 = vadd.f32 0.0, %v1331
        %v1333 = vpop.f32.mrf.mxu0
        %v1334 = vpop.f32.mrf.mxu0
        %v1335 = vpop.f32.mrf.mxu0
        %1336 = vmatprep.mubr.bf16.mxu0 0
        %1337 = vmatmul.mubr.bf16.gmra.mxu0 %v1203
        %v1338 = vpop.f32.mrf.mxu0
        %v1339 = vadd.f32 0.0, %v1338
        %v1340 = vpop.f32.mrf.mxu0
        %v1341 = vpop.f32.mrf.mxu0
        %v1342 = vpop.f32.mrf.mxu0
        %1343 = vmatprep.mubr.bf16.mxu0 0
        %1344 = vmatmul.mubr.bf16.gmra.mxu0 %v1205
        %v1345 = vpop.f32.mrf.mxu0
        %v1346 = vadd.f32 0.0, %v1345
        %v1347 = vpop.f32.mrf.mxu0
        %v1348 = vpop.f32.mrf.mxu0
        %v1349 = vpop.f32.mrf.mxu0
        %1350 = vdwg.mxu0
        %v1351 = vadd.f32 %v1114, %v1297
        %v1352 = vadd.f32 %v1121, %v1304
        %v1353 = vadd.f32 %v1128, %v1311
        %v1354 = vadd.f32 %v1135, %v1318
        %v1355 = vadd.f32 %v1142, %v1325
        %v1356 = vadd.f32 %v1149, %v1332
        %v1357 = vadd.f32 %v1156, %v1339
        %v1358 = vadd.f32 %v1163, %v1346
        %v1359 = vld [vmem:[#allocation2 + $0x8] sm:$0xf]
        %v1360 = vld [vmem:[#allocation2 + $0xc] sm:$0xf]
        %v1361 = vld [vmem:[#allocation2 + $0x10] sm:$0xf]
        %v1362 = vld [vmem:[#allocation2 + $0x14] sm:$0xf]
        %v1363 = vld [vmem:[#allocation2 + $0x18] sm:$0xf]
        %v1364 = vld [vmem:[#allocation2 + $0x1c] sm:$0xf]
        %v1365 = vld [vmem:[#allocation2 + $0x20] sm:$0xf]
        %v1366 = vld [vmem:[#allocation2 + $0x24] sm:$0xf]
        %v1367 = vld [vmem:[#allocation2 + $0x28] sm:$0xf]
        %v1368 = vld [vmem:[#allocation2 + $0x2c] sm:$0xf]
        %v1369 = vld [vmem:[#allocation2 + $0x30] sm:$0xf]
        %v1370 = vld [vmem:[#allocation2 + $0x34] sm:$0xf]
        %v1371 = vld [vmem:[#allocation2 + $0x38] sm:$0xf]
        %v1372 = vld [vmem:[#allocation2 + $0x3c] sm:$0xf]
        %v1373 = vld [vmem:[#allocation2 + $0x40] sm:$0xf]
        %v1374 = vld [vmem:[#allocation2 + $0x44] sm:$0xf]
        %v1375 = vld [vmem:[#allocation8 + $0xc0] sm:$0xf]
        %v1376 = vld [vmem:[#allocation8 + $0xc4] sm:$0xf]
        %v1377 = vld [vmem:[#allocation8 + $0xc8] sm:$0xf]
        %v1378 = vld [vmem:[#allocation8 + $0xcc] sm:$0xf]
        %v1379 = vld [vmem:[#allocation8 + $0xd0] sm:$0xf]
        %v1380 = vld [vmem:[#allocation8 + $0xd4] sm:$0xf]
        %v1381 = vld [vmem:[#allocation8 + $0xd8] sm:$0xf]
        %v1382 = vld [vmem:[#allocation8 + $0xdc] sm:$0xf]
        %v1383 = vld [vmem:[#allocation8 + $0xe0] sm:$0xf]
        %v1384 = vld [vmem:[#allocation8 + $0xe4] sm:$0xf]
        %v1385 = vld [vmem:[#allocation8 + $0xe8] sm:$0xf]
        %v1386 = vld [vmem:[#allocation8 + $0xec] sm:$0xf]
        %v1387 = vld [vmem:[#allocation8 + $0xf0] sm:$0xf]
        %v1388 = vld [vmem:[#allocation8 + $0xf4] sm:$0xf]
        %v1389 = vld [vmem:[#allocation8 + $0xf8] sm:$0xf]
        %v1390 = vld [vmem:[#allocation8 + $0xfc] sm:$0xf]
        %v1407 = vunpack.c.l.b16 %v1359
        %v1408 = vunpack.c.l.b16 %v1360
        %v1409 = vunpack.c.l.b16 %v1361
        %v1410 = vunpack.c.l.b16 %v1362
        %v1411 = vunpack.c.l.b16 %v1363
        %v1412 = vunpack.c.l.b16 %v1364
        %v1413 = vunpack.c.l.b16 %v1365
        %v1414 = vunpack.c.l.b16 %v1366
        %v1415 = vunpack.c.l.b16 %v1367
        %v1416 = vunpack.c.l.b16 %v1368
        %v1417 = vunpack.c.l.b16 %v1369
        %v1418 = vunpack.c.l.b16 %v1370
        %v1419 = vunpack.c.l.b16 %v1371
        %v1420 = vunpack.c.l.b16 %v1372
        %v1421 = vunpack.c.l.b16 %v1373
        %v1422 = vunpack.c.l.b16 %v1374
        %v1423 = vpack.c.b16 %v1408, %v1407
        %v1424 = vpack.c.b16 %v1410, %v1409
        %v1425 = vpack.c.b16 %v1412, %v1411
        %v1426 = vpack.c.b16 %v1414, %v1413
        %v1427 = vpack.c.b16 %v1416, %v1415
        %v1428 = vpack.c.b16 %v1418, %v1417
        %v1429 = vpack.c.b16 %v1420, %v1419
        %v1430 = vpack.c.b16 %v1422, %v1421
        %v1455 = vunpack.c.l.b16 %v1375
        %v1456 = vunpack.c.l.b16 %v1376
        %v1457 = vunpack.c.l.b16 %v1377
        %v1458 = vunpack.c.l.b16 %v1378
        %v1459 = vunpack.c.l.b16 %v1379
        %v1460 = vunpack.c.l.b16 %v1380
        %v1461 = vunpack.c.l.b16 %v1381
        %v1462 = vunpack.c.l.b16 %v1382
        %v1463 = vunpack.c.l.b16 %v1383
        %v1464 = vunpack.c.l.b16 %v1384
        %v1465 = vunpack.c.l.b16 %v1385
        %v1466 = vunpack.c.l.b16 %v1386
        %v1467 = vunpack.c.l.b16 %v1387
        %v1468 = vunpack.c.l.b16 %v1388
        %v1469 = vunpack.c.l.b16 %v1389
        %v1470 = vunpack.c.l.b16 %v1390
        %v1471 = vpack.c.b16 %v1456, %v1455
        %v1472 = vpack.c.b16 %v1458, %v1457
        %v1473 = vpack.c.b16 %v1460, %v1459
        %v1474 = vpack.c.b16 %v1462, %v1461
        %v1475 = vpack.c.b16 %v1464, %v1463
        %v1476 = vpack.c.b16 %v1466, %v1465
        %v1477 = vpack.c.b16 %v1468, %v1467
        %v1478 = vpack.c.b16 %v1470, %v1469
        %1487 = vmatprep.subr.bf16.mxu0 0
        %1488 = vmatpush1.bf16.msra.mxu0 %v1478
        %1489 = vmatprep.subr.bf16.mxu0 0
        %1490 = vmatpush1.bf16.msra.mxu0 %v1477
        %1491 = vmatprep.subr.bf16.mxu0 0
        %1492 = vmatpush1.bf16.msra.mxu0 %v1476
        %1493 = vmatprep.subr.bf16.mxu0 0
        %1494 = vmatpush1.bf16.msra.mxu0 %v1475
        %1495 = vmatprep.subr.bf16.mxu0 0
        %1496 = vmatpush1.bf16.msra.mxu0 %v1474
        %1497 = vmatprep.subr.bf16.mxu0 0
        %1498 = vmatpush1.bf16.msra.mxu0 %v1473
        %1499 = vmatprep.subr.bf16.mxu0 0
        %1500 = vmatpush1.bf16.msra.mxu0 %v1472
        %1501 = vmatprep.subr.bf16.mxu0 0
        %1502 = vmatpush1.bf16.msra.mxu0 %v1471
        %1503 = vmatprep.subr.bf16.mxu0 0
        %1504 = vmatpush2.bf16.msra.mxu0 0
        %1505 = vmatprep.subr.bf16.mxu0 0
        %1506 = vmatpush2.bf16.msra.mxu0 0
        %1507 = vmatprep.subr.bf16.mxu0 0
        %1508 = vmatpush2.bf16.msra.mxu0 0
        %1509 = vmatprep.subr.bf16.mxu0 0
        %1510 = vmatpush2.bf16.msra.mxu0 0
        %1511 = vmatprep.subr.bf16.mxu0 0
        %1512 = vmatpush2.bf16.msra.mxu0 0
        %1513 = vmatprep.subr.bf16.mxu0 0
        %1514 = vmatpush2.bf16.msra.mxu0 0
        %1515 = vmatprep.subr.bf16.mxu0 0
        %1516 = vmatpush2.bf16.msra.mxu0 0
        %1517 = vmatprep.subr.bf16.mxu0 0
        %1518 = vmatpush2.bf16.msra.mxu0 0
        %1519 = vmatprep.mubr.bf16.mxu0 0
        %1520 = vmatmul.mubr.bf16.gmra.mxu0 %v1423
        %v1521 = vpop.f32.mrf.mxu0
        %v1522 = vadd.f32 0.0, %v1521
        %v1523 = vpop.f32.mrf.mxu0
        %v1524 = vpop.f32.mrf.mxu0
        %v1525 = vpop.f32.mrf.mxu0
        %1526 = vmatprep.mubr.bf16.mxu0 0
        %1527 = vmatmul.mubr.bf16.gmra.mxu0 %v1424
        %v1528 = vpop.f32.mrf.mxu0
        %v1529 = vadd.f32 0.0, %v1528
        %v1530 = vpop.f32.mrf.mxu0
        %v1531 = vpop.f32.mrf.mxu0
        %v1532 = vpop.f32.mrf.mxu0
        %1533 = vmatprep.mubr.bf16.mxu0 0
        %1534 = vmatmul.mubr.bf16.gmra.mxu0 %v1425
        %v1535 = vpop.f32.mrf.mxu0
        %v1536 = vadd.f32 0.0, %v1535
        %v1537 = vpop.f32.mrf.mxu0
        %v1538 = vpop.f32.mrf.mxu0
        %v1539 = vpop.f32.mrf.mxu0
        %1540 = vmatprep.mubr.bf16.mxu0 0
        %1541 = vmatmul.mubr.bf16.gmra.mxu0 %v1426
        %v1542 = vpop.f32.mrf.mxu0
        %v1543 = vadd.f32 0.0, %v1542
        %v1544 = vpop.f32.mrf.mxu0
        %v1545 = vpop.f32.mrf.mxu0
        %v1546 = vpop.f32.mrf.mxu0
        %1547 = vmatprep.mubr.bf16.mxu0 0
        %1548 = vmatmul.mubr.bf16.gmra.mxu0 %v1427
        %v1549 = vpop.f32.mrf.mxu0
        %v1550 = vadd.f32 0.0, %v1549
        %v1551 = vpop.f32.mrf.mxu0
        %v1552 = vpop.f32.mrf.mxu0
        %v1553 = vpop.f32.mrf.mxu0
        %1554 = vmatprep.mubr.bf16.mxu0 0
        %1555 = vmatmul.mubr.bf16.gmra.mxu0 %v1428
        %v1556 = vpop.f32.mrf.mxu0
        %v1557 = vadd.f32 0.0, %v1556
        %v1558 = vpop.f32.mrf.mxu0
        %v1559 = vpop.f32.mrf.mxu0
        %v1560 = vpop.f32.mrf.mxu0
        %1561 = vmatprep.mubr.bf16.mxu0 0
        %1562 = vmatmul.mubr.bf16.gmra.mxu0 %v1429
        %v1563 = vpop.f32.mrf.mxu0
        %v1564 = vadd.f32 0.0, %v1563
        %v1565 = vpop.f32.mrf.mxu0
        %v1566 = vpop.f32.mrf.mxu0
        %v1567 = vpop.f32.mrf.mxu0
        %1568 = vmatprep.mubr.bf16.mxu0 0
        %1569 = vmatmul.mubr.bf16.gmra.mxu0 %v1430
        %v1570 = vpop.f32.mrf.mxu0
        %v1571 = vadd.f32 0.0, %v1570
        %v1572 = vpop.f32.mrf.mxu0
        %v1573 = vpop.f32.mrf.mxu0
        %v1574 = vpop.f32.mrf.mxu0
        %1575 = vdwg.mxu0
        %v1576 = vadd.f32 %v1351, %v1522
        %v1577 = vadd.f32 %v1352, %v1529
        %v1578 = vadd.f32 %v1353, %v1536
        %v1579 = vadd.f32 %v1354, %v1543
        %v1580 = vadd.f32 %v1355, %v1550
        %v1581 = vadd.f32 %v1356, %v1557
        %v1582 = vadd.f32 %v1357, %v1564
        %v1583 = vadd.f32 %v1358, %v1571
        %v1584 = vld [vmem:[#allocation2 + $0x8] sm:$0xf]
        %v1585 = vld [vmem:[#allocation2 + $0xc] sm:$0xf]
        %v1586 = vld [vmem:[#allocation2 + $0x10] sm:$0xf]
        %v1587 = vld [vmem:[#allocation2 + $0x14] sm:$0xf]
        %v1588 = vld [vmem:[#allocation2 + $0x18] sm:$0xf]
        %v1589 = vld [vmem:[#allocation2 + $0x1c] sm:$0xf]
        %v1590 = vld [vmem:[#allocation2 + $0x20] sm:$0xf]
        %v1591 = vld [vmem:[#allocation2 + $0x24] sm:$0xf]
        %v1592 = vld [vmem:[#allocation2 + $0x28] sm:$0xf]
        %v1593 = vld [vmem:[#allocation2 + $0x2c] sm:$0xf]
        %v1594 = vld [vmem:[#allocation2 + $0x30] sm:$0xf]
        %v1595 = vld [vmem:[#allocation2 + $0x34] sm:$0xf]
        %v1596 = vld [vmem:[#allocation2 + $0x38] sm:$0xf]
        %v1597 = vld [vmem:[#allocation2 + $0x3c] sm:$0xf]
        %v1598 = vld [vmem:[#allocation2 + $0x40] sm:$0xf]
        %v1599 = vld [vmem:[#allocation2 + $0x44] sm:$0xf]
        %v1600 = vld [vmem:[#allocation2 + $0x48] sm:$0x1]
        %v1601 = vld [vmem:[#allocation8 + $0x100] sm:$0xf]
        %v1602 = vld [vmem:[#allocation8 + $0x104] sm:$0xf]
        %v1603 = vld [vmem:[#allocation8 + $0x108] sm:$0xf]
        %v1604 = vld [vmem:[#allocation8 + $0x10c] sm:$0xf]
        %v1605 = vld [vmem:[#allocation8 + $0x110] sm:$0xf]
        %v1606 = vld [vmem:[#allocation8 + $0x114] sm:$0xf]
        %v1607 = vld [vmem:[#allocation8 + $0x118] sm:$0xf]
        %v1608 = vld [vmem:[#allocation8 + $0x11c] sm:$0xf]
        %v1609 = vld [vmem:[#allocation8 + $0x120] sm:$0xf]
        %v1610 = vld [vmem:[#allocation8 + $0x124] sm:$0xf]
        %v1611 = vld [vmem:[#allocation8 + $0x128] sm:$0xf]
        %v1612 = vld [vmem:[#allocation8 + $0x12c] sm:$0xf]
        %v1613 = vld [vmem:[#allocation8 + $0x130] sm:$0xf]
        %v1614 = vld [vmem:[#allocation8 + $0x134] sm:$0xf]
        %v1615 = vld [vmem:[#allocation8 + $0x138] sm:$0xf]
        %v1616 = vld [vmem:[#allocation8 + $0x13c] sm:$0xf]
        %v1634 = vunpack.c.l.b16 %v1584
        %v1635 = vunpack.c.l.b16 %v1585
        %v1636 = vunpack.c.l.b16 %v1586
        %v1637 = vunpack.c.l.b16 %v1587
        %v1638 = vunpack.c.l.b16 %v1588
        %v1639 = vunpack.c.l.b16 %v1589
        %v1640 = vunpack.c.l.b16 %v1590
        %v1641 = vunpack.c.l.b16 %v1591
        %v1642 = vunpack.c.l.b16 %v1592
        %v1643 = vunpack.c.l.b16 %v1593
        %v1644 = vunpack.c.l.b16 %v1594
        %v1645 = vunpack.c.l.b16 %v1595
        %v1646 = vunpack.c.l.b16 %v1596
        %v1647 = vunpack.c.l.b16 %v1597
        %v1648 = vunpack.c.l.b16 %v1598
        %v1649 = vunpack.c.l.b16 %v1599
        %v1650 = vunpack.c.l.b16 %v1600
        %v1651 = vpack.c.b16 %v1635, %v1634
        %v1652 = vpack.c.b16 %v1637, %v1636
        %v1653 = vpack.c.b16 %v1639, %v1638
        %v1654 = vpack.c.b16 %v1641, %v1640
        %v1655 = vpack.c.b16 %v1643, %v1642
        %v1656 = vpack.c.b16 %v1645, %v1644
        %v1657 = vpack.c.b16 %v1647, %v1646
        %v1658 = vpack.c.b16 %v1649, %v1648
        %v1659 = vpack.c.b16 %v1650, %v1650
        %v1661 = vshrl.u32 %v1651, 16
        %v1663 = vshll.u32 %v1651, 16
        %v1665 = vrot.slane %v1663, 1
        %v1666 = vor.u32 %v1661, %v1665
        %v1668 = vshll.u32 %v1652, 16
        %v1670 = vrot.slane %v1668, 1
        %v1671 = vsel %vm809, %v1666, %v1670
        %v1672 = vshrl.u32 %v1652, 16
        %v1674 = vor.u32 %v1672, %v1670
        %v1676 = vshll.u32 %v1653, 16
        %v1678 = vrot.slane %v1676, 1
        %v1679 = vsel %vm809, %v1674, %v1678
        %v1680 = vshrl.u32 %v1653, 16
        %v1682 = vor.u32 %v1680, %v1678
        %v1684 = vshll.u32 %v1654, 16
        %v1686 = vrot.slane %v1684, 1
        %v1687 = vsel %vm809, %v1682, %v1686
        %v1688 = vshrl.u32 %v1654, 16
        %v1690 = vor.u32 %v1688, %v1686
        %v1692 = vshll.u32 %v1655, 16
        %v1694 = vrot.slane %v1692, 1
        %v1695 = vsel %vm809, %v1690, %v1694
        %v1696 = vshrl.u32 %v1655, 16
        %v1698 = vor.u32 %v1696, %v1694
        %v1700 = vshll.u32 %v1656, 16
        %v1702 = vrot.slane %v1700, 1
        %v1703 = vsel %vm809, %v1698, %v1702
        %v1704 = vshrl.u32 %v1656, 16
        %v1706 = vor.u32 %v1704, %v1702
        %v1708 = vshll.u32 %v1657, 16
        %v1710 = vrot.slane %v1708, 1
        %v1711 = vsel %vm809, %v1706, %v1710
        %v1712 = vshrl.u32 %v1657, 16
        %v1714 = vor.u32 %v1712, %v1710
        %v1716 = vshll.u32 %v1658, 16
        %v1718 = vrot.slane %v1716, 1
        %v1719 = vsel %vm809, %v1714, %v1718
        %v1720 = vshrl.u32 %v1658, 16
        %v1722 = vor.u32 %v1720, %v1718
        %v1724 = vshll.u32 %v1659, 16
        %v1726 = vrot.slane %v1724, 1
        %v1727 = vsel %vm809, %v1722, %v1726
        %v1752 = vunpack.c.l.b16 %v1601
        %v1753 = vunpack.c.l.b16 %v1602
        %v1754 = vunpack.c.l.b16 %v1603
        %v1755 = vunpack.c.l.b16 %v1604
        %v1756 = vunpack.c.l.b16 %v1605
        %v1757 = vunpack.c.l.b16 %v1606
        %v1758 = vunpack.c.l.b16 %v1607
        %v1759 = vunpack.c.l.b16 %v1608
        %v1760 = vunpack.c.l.b16 %v1609
        %v1761 = vunpack.c.l.b16 %v1610
        %v1762 = vunpack.c.l.b16 %v1611
        %v1763 = vunpack.c.l.b16 %v1612
        %v1764 = vunpack.c.l.b16 %v1613
        %v1765 = vunpack.c.l.b16 %v1614
        %v1766 = vunpack.c.l.b16 %v1615
        %v1767 = vunpack.c.l.b16 %v1616
        %v1768 = vpack.c.b16 %v1753, %v1752
        %v1769 = vpack.c.b16 %v1755, %v1754
        %v1770 = vpack.c.b16 %v1757, %v1756
        %v1771 = vpack.c.b16 %v1759, %v1758
        %v1772 = vpack.c.b16 %v1761, %v1760
        %v1773 = vpack.c.b16 %v1763, %v1762
        %v1774 = vpack.c.b16 %v1765, %v1764
        %v1775 = vpack.c.b16 %v1767, %v1766
        %1784 = vmatprep.subr.bf16.mxu0 0
        %1785 = vmatpush1.bf16.msra.mxu0 %v1775
        %1786 = vmatprep.subr.bf16.mxu0 0
        %1787 = vmatpush1.bf16.msra.mxu0 %v1774
        %1788 = vmatprep.subr.bf16.mxu0 0
        %1789 = vmatpush1.bf16.msra.mxu0 %v1773
        %1790 = vmatprep.subr.bf16.mxu0 0
        %1791 = vmatpush1.bf16.msra.mxu0 %v1772
        %1792 = vmatprep.subr.bf16.mxu0 0
        %1793 = vmatpush1.bf16.msra.mxu0 %v1771
        %1794 = vmatprep.subr.bf16.mxu0 0
        %1795 = vmatpush1.bf16.msra.mxu0 %v1770
        %1796 = vmatprep.subr.bf16.mxu0 0
        %1797 = vmatpush1.bf16.msra.mxu0 %v1769
        %1798 = vmatprep.subr.bf16.mxu0 0
        %1799 = vmatpush1.bf16.msra.mxu0 %v1768
        %1800 = vmatprep.subr.bf16.mxu0 0
        %1801 = vmatpush2.bf16.msra.mxu0 0
        %1802 = vmatprep.subr.bf16.mxu0 0
        %1803 = vmatpush2.bf16.msra.mxu0 0
        %1804 = vmatprep.subr.bf16.mxu0 0
        %1805 = vmatpush2.bf16.msra.mxu0 0
        %1806 = vmatprep.subr.bf16.mxu0 0
        %1807 = vmatpush2.bf16.msra.mxu0 0
        %1808 = vmatprep.subr.bf16.mxu0 0
        %1809 = vmatpush2.bf16.msra.mxu0 0
        %1810 = vmatprep.subr.bf16.mxu0 0
        %1811 = vmatpush2.bf16.msra.mxu0 0
        %1812 = vmatprep.subr.bf16.mxu0 0
        %1813 = vmatpush2.bf16.msra.mxu0 0
        %1814 = vmatprep.subr.bf16.mxu0 0
        %1815 = vmatpush2.bf16.msra.mxu0 0
        %1816 = vmatprep.mubr.bf16.mxu0 0
        %1817 = vmatmul.mubr.bf16.gmra.mxu0 %v1671
        %v1818 = vpop.f32.mrf.mxu0
        %v1819 = vadd.f32 0.0, %v1818
        %v1820 = vpop.f32.mrf.mxu0
        %v1821 = vpop.f32.mrf.mxu0
        %v1822 = vpop.f32.mrf.mxu0
        %1823 = vmatprep.mubr.bf16.mxu0 0
        %1824 = vmatmul.mubr.bf16.gmra.mxu0 %v1679
        %v1825 = vpop.f32.mrf.mxu0
        %v1826 = vadd.f32 0.0, %v1825
        %v1827 = vpop.f32.mrf.mxu0
        %v1828 = vpop.f32.mrf.mxu0
        %v1829 = vpop.f32.mrf.mxu0
        %1830 = vmatprep.mubr.bf16.mxu0 0
        %1831 = vmatmul.mubr.bf16.gmra.mxu0 %v1687
        %v1832 = vpop.f32.mrf.mxu0
        %v1833 = vadd.f32 0.0, %v1832
        %v1834 = vpop.f32.mrf.mxu0
        %v1835 = vpop.f32.mrf.mxu0
        %v1836 = vpop.f32.mrf.mxu0
        %1837 = vmatprep.mubr.bf16.mxu0 0
        %1838 = vmatmul.mubr.bf16.gmra.mxu0 %v1695
        %v1839 = vpop.f32.mrf.mxu0
        %v1840 = vadd.f32 0.0, %v1839
        %v1841 = vpop.f32.mrf.mxu0
        %v1842 = vpop.f32.mrf.mxu0
        %v1843 = vpop.f32.mrf.mxu0
        %1844 = vmatprep.mubr.bf16.mxu0 0
        %1845 = vmatmul.mubr.bf16.gmra.mxu0 %v1703
        %v1846 = vpop.f32.mrf.mxu0
        %v1847 = vadd.f32 0.0, %v1846
        %v1848 = vpop.f32.mrf.mxu0
        %v1849 = vpop.f32.mrf.mxu0
        %v1850 = vpop.f32.mrf.mxu0
        %1851 = vmatprep.mubr.bf16.mxu0 0
        %1852 = vmatmul.mubr.bf16.gmra.mxu0 %v1711
        %v1853 = vpop.f32.mrf.mxu0
        %v1854 = vadd.f32 0.0, %v1853
        %v1855 = vpop.f32.mrf.mxu0
        %v1856 = vpop.f32.mrf.mxu0
        %v1857 = vpop.f32.mrf.mxu0
        %1858 = vmatprep.mubr.bf16.mxu0 0
        %1859 = vmatmul.mubr.bf16.gmra.mxu0 %v1719
        %v1860 = vpop.f32.mrf.mxu0
        %v1861 = vadd.f32 0.0, %v1860
        %v1862 = vpop.f32.mrf.mxu0
        %v1863 = vpop.f32.mrf.mxu0
        %v1864 = vpop.f32.mrf.mxu0
        %1865 = vmatprep.mubr.bf16.mxu0 0
        %1866 = vmatmul.mubr.bf16.gmra.mxu0 %v1727
        %v1867 = vpop.f32.mrf.mxu0
        %v1868 = vadd.f32 0.0, %v1867
        %v1869 = vpop.f32.mrf.mxu0
        %v1870 = vpop.f32.mrf.mxu0
        %v1871 = vpop.f32.mrf.mxu0
        %1872 = vdwg.mxu0
        %v1873 = vadd.f32 %v1576, %v1819
        %v1874 = vadd.f32 %v1577, %v1826
        %v1875 = vadd.f32 %v1578, %v1833
        %v1876 = vadd.f32 %v1579, %v1840
        %v1877 = vadd.f32 %v1580, %v1847
        %v1878 = vadd.f32 %v1581, %v1854
        %v1879 = vadd.f32 %v1582, %v1861
        %v1880 = vadd.f32 %v1583, %v1868
        %v1881 = vld [vmem:[#allocation2 + $0x8] sm:$0xe]
        %v1882 = vld [vmem:[#allocation8 + $0x140] sm:$0xf]
        %v1883 = vld [vmem:[#allocation8 + $0x144] sm:$0xf]
        %v1884 = vld [vmem:[#allocation8 + $0x148] sm:$0xf]
        %v1885 = vld [vmem:[#allocation8 + $0x14c] sm:$0xf]
        %v1886 = vld [vmem:[#allocation8 + $0x150] sm:$0xf]
        %v1887 = vld [vmem:[#allocation8 + $0x154] sm:$0xf]
        %v1888 = vld [vmem:[#allocation8 + $0x158] sm:$0xf]
        %v1889 = vld [vmem:[#allocation8 + $0x15c] sm:$0xf]
        %v1890 = vld [vmem:[#allocation8 + $0x160] sm:$0xf]
        %v1891 = vld [vmem:[#allocation8 + $0x164] sm:$0xf]
        %v1892 = vld [vmem:[#allocation8 + $0x168] sm:$0xf]
        %v1893 = vld [vmem:[#allocation8 + $0x16c] sm:$0xf]
        %v1894 = vld [vmem:[#allocation8 + $0x170] sm:$0xf]
        %v1895 = vld [vmem:[#allocation8 + $0x174] sm:$0xf]
        %v1896 = vld [vmem:[#allocation8 + $0x178] sm:$0xf]
        %v1897 = vld [vmem:[#allocation8 + $0x17c] sm:$0xf]
        %v1899 = vunpack.c.l.b16 %v1881
        %v1900 = vpack.c.b16 %v1635, %v1899
        %v1901 = vrot.slane %v1900, 1
        %v1902 = vrot.slane %v1652, 1
        %v1903 = vsel %vm1188, %v1901, %v1902
        %v1904 = vrot.slane %v1653, 1
        %v1905 = vsel %vm1188, %v1902, %v1904
        %v1906 = vrot.slane %v1654, 1
        %v1907 = vsel %vm1188, %v1904, %v1906
        %v1908 = vrot.slane %v1655, 1
        %v1909 = vsel %vm1188, %v1906, %v1908
        %v1910 = vrot.slane %v1656, 1
        %v1911 = vsel %vm1188, %v1908, %v1910
        %v1912 = vrot.slane %v1657, 1
        %v1913 = vsel %vm1188, %v1910, %v1912
        %v1914 = vrot.slane %v1658, 1
        %v1915 = vsel %vm1188, %v1912, %v1914
        %v1916 = vrot.slane %v1659, 1
        %v1917 = vsel %vm1188, %v1914, %v1916
        %v1942 = vunpack.c.l.b16 %v1882
        %v1943 = vunpack.c.l.b16 %v1883
        %v1944 = vunpack.c.l.b16 %v1884
        %v1945 = vunpack.c.l.b16 %v1885
        %v1946 = vunpack.c.l.b16 %v1886
        %v1947 = vunpack.c.l.b16 %v1887
        %v1948 = vunpack.c.l.b16 %v1888
        %v1949 = vunpack.c.l.b16 %v1889
        %v1950 = vunpack.c.l.b16 %v1890
        %v1951 = vunpack.c.l.b16 %v1891
        %v1952 = vunpack.c.l.b16 %v1892
        %v1953 = vunpack.c.l.b16 %v1893
        %v1954 = vunpack.c.l.b16 %v1894
        %v1955 = vunpack.c.l.b16 %v1895
        %v1956 = vunpack.c.l.b16 %v1896
        %v1957 = vunpack.c.l.b16 %v1897
        %v1958 = vpack.c.b16 %v1943, %v1942
        %v1959 = vpack.c.b16 %v1945, %v1944
        %v1960 = vpack.c.b16 %v1947, %v1946
        %v1961 = vpack.c.b16 %v1949, %v1948
        %v1962 = vpack.c.b16 %v1951, %v1950
        %v1963 = vpack.c.b16 %v1953, %v1952
        %v1964 = vpack.c.b16 %v1955, %v1954
        %v1965 = vpack.c.b16 %v1957, %v1956
        %1974 = vmatprep.subr.bf16.mxu0 0
        %1975 = vmatpush1.bf16.msra.mxu0 %v1965
        %1976 = vmatprep.subr.bf16.mxu0 0
        %1977 = vmatpush1.bf16.msra.mxu0 %v1964
        %1978 = vmatprep.subr.bf16.mxu0 0
        %1979 = vmatpush1.bf16.msra.mxu0 %v1963
        %1980 = vmatprep.subr.bf16.mxu0 0
        %1981 = vmatpush1.bf16.msra.mxu0 %v1962
        %1982 = vmatprep.subr.bf16.mxu0 0
        %1983 = vmatpush1.bf16.msra.mxu0 %v1961
        %1984 = vmatprep.subr.bf16.mxu0 0
        %1985 = vmatpush1.bf16.msra.mxu0 %v1960
        %1986 = vmatprep.subr.bf16.mxu0 0
        %1987 = vmatpush1.bf16.msra.mxu0 %v1959
        %1988 = vmatprep.subr.bf16.mxu0 0
        %1989 = vmatpush1.bf16.msra.mxu0 %v1958
        %1990 = vmatprep.subr.bf16.mxu0 0
        %1991 = vmatpush2.bf16.msra.mxu0 0
        %1992 = vmatprep.subr.bf16.mxu0 0
        %1993 = vmatpush2.bf16.msra.mxu0 0
        %1994 = vmatprep.subr.bf16.mxu0 0
        %1995 = vmatpush2.bf16.msra.mxu0 0
        %1996 = vmatprep.subr.bf16.mxu0 0
        %1997 = vmatpush2.bf16.msra.mxu0 0
        %1998 = vmatprep.subr.bf16.mxu0 0
        %1999 = vmatpush2.bf16.msra.mxu0 0
        %2000 = vmatprep.subr.bf16.mxu0 0
        %2001 = vmatpush2.bf16.msra.mxu0 0
        %2002 = vmatprep.subr.bf16.mxu0 0
        %2003 = vmatpush2.bf16.msra.mxu0 0
        %2004 = vmatprep.subr.bf16.mxu0 0
        %2005 = vmatpush2.bf16.msra.mxu0 0
        %2006 = vmatprep.mubr.bf16.mxu0 0
        %2007 = vmatmul.mubr.bf16.gmra.mxu0 %v1903
        %v2008 = vpop.f32.mrf.mxu0
        %v2009 = vadd.f32 0.0, %v2008
        %v2010 = vpop.f32.mrf.mxu0
        %v2011 = vpop.f32.mrf.mxu0
        %v2012 = vpop.f32.mrf.mxu0
        %2013 = vmatprep.mubr.bf16.mxu0 0
        %2014 = vmatmul.mubr.bf16.gmra.mxu0 %v1905
        %v2015 = vpop.f32.mrf.mxu0
        %v2016 = vadd.f32 0.0, %v2015
        %v2017 = vpop.f32.mrf.mxu0
        %v2018 = vpop.f32.mrf.mxu0
        %v2019 = vpop.f32.mrf.mxu0
        %2020 = vmatprep.mubr.bf16.mxu0 0
        %2021 = vmatmul.mubr.bf16.gmra.mxu0 %v1907
        %v2022 = vpop.f32.mrf.mxu0
        %v2023 = vadd.f32 0.0, %v2022
        %v2024 = vpop.f32.mrf.mxu0
        %v2025 = vpop.f32.mrf.mxu0
        %v2026 = vpop.f32.mrf.mxu0
        %2027 = vmatprep.mubr.bf16.mxu0 0
        %2028 = vmatmul.mubr.bf16.gmra.mxu0 %v1909
        %v2029 = vpop.f32.mrf.mxu0
        %v2030 = vadd.f32 0.0, %v2029
        %v2031 = vpop.f32.mrf.mxu0
        %v2032 = vpop.f32.mrf.mxu0
        %v2033 = vpop.f32.mrf.mxu0
        %2034 = vmatprep.mubr.bf16.mxu0 0
        %2035 = vmatmul.mubr.bf16.gmra.mxu0 %v1911
        %v2036 = vpop.f32.mrf.mxu0
        %v2037 = vadd.f32 0.0, %v2036
        %v2038 = vpop.f32.mrf.mxu0
        %v2039 = vpop.f32.mrf.mxu0
        %v2040 = vpop.f32.mrf.mxu0
        %2041 = vmatprep.mubr.bf16.mxu0 0
        %2042 = vmatmul.mubr.bf16.gmra.mxu0 %v1913
        %v2043 = vpop.f32.mrf.mxu0
        %v2044 = vadd.f32 0.0, %v2043
        %v2045 = vpop.f32.mrf.mxu0
        %v2046 = vpop.f32.mrf.mxu0
        %v2047 = vpop.f32.mrf.mxu0
        %2048 = vmatprep.mubr.bf16.mxu0 0
        %2049 = vmatmul.mubr.bf16.gmra.mxu0 %v1915
        %v2050 = vpop.f32.mrf.mxu0
        %v2051 = vadd.f32 0.0, %v2050
        %v2052 = vpop.f32.mrf.mxu0
        %v2053 = vpop.f32.mrf.mxu0
        %v2054 = vpop.f32.mrf.mxu0
        %2055 = vmatprep.mubr.bf16.mxu0 0
        %2056 = vmatmul.mubr.bf16.gmra.mxu0 %v1917
        %v2057 = vpop.f32.mrf.mxu0
        %v2058 = vadd.f32 0.0, %v2057
        %v2059 = vpop.f32.mrf.mxu0
        %v2060 = vpop.f32.mrf.mxu0
        %v2061 = vpop.f32.mrf.mxu0
        %2062 = vdwg.mxu0
        %v2063 = vadd.f32 %v1873, %v2009
        %v2064 = vadd.f32 %v1874, %v2016
        %v2065 = vadd.f32 %v1875, %v2023
        %v2066 = vadd.f32 %v1876, %v2030
        %v2067 = vadd.f32 %v1877, %v2037
        %v2068 = vadd.f32 %v1878, %v2044
        %v2069 = vadd.f32 %v1879, %v2051
        %v2070 = vadd.f32 %v1880, %v2058
        %v2071 = vld [vmem:[#allocation2 + $0x10] sm:$0xf]
        %v2072 = vld [vmem:[#allocation2 + $0x14] sm:$0xf]
        %v2073 = vld [vmem:[#allocation2 + $0x18] sm:$0xf]
        %v2074 = vld [vmem:[#allocation2 + $0x1c] sm:$0xf]
        %v2075 = vld [vmem:[#allocation2 + $0x20] sm:$0xf]
        %v2076 = vld [vmem:[#allocation2 + $0x24] sm:$0xf]
        %v2077 = vld [vmem:[#allocation2 + $0x28] sm:$0xf]
        %v2078 = vld [vmem:[#allocation2 + $0x2c] sm:$0xf]
        %v2079 = vld [vmem:[#allocation2 + $0x30] sm:$0xf]
        %v2080 = vld [vmem:[#allocation2 + $0x34] sm:$0xf]
        %v2081 = vld [vmem:[#allocation2 + $0x38] sm:$0xf]
        %v2082 = vld [vmem:[#allocation2 + $0x3c] sm:$0xf]
        %v2083 = vld [vmem:[#allocation2 + $0x40] sm:$0xf]
        %v2084 = vld [vmem:[#allocation2 + $0x44] sm:$0xf]
        %v2085 = vld [vmem:[#allocation2 + $0x48] sm:$0xf]
        %v2086 = vld [vmem:[#allocation2 + $0x4c] sm:$0xf]
        %v2087 = vld [vmem:[#allocation8 + $0x180] sm:$0xf]
        %v2088 = vld [vmem:[#allocation8 + $0x184] sm:$0xf]
        %v2089 = vld [vmem:[#allocation8 + $0x188] sm:$0xf]
        %v2090 = vld [vmem:[#allocation8 + $0x18c] sm:$0xf]
        %v2091 = vld [vmem:[#allocation8 + $0x190] sm:$0xf]
        %v2092 = vld [vmem:[#allocation8 + $0x194] sm:$0xf]
        %v2093 = vld [vmem:[#allocation8 + $0x198] sm:$0xf]
        %v2094 = vld [vmem:[#allocation8 + $0x19c] sm:$0xf]
        %v2095 = vld [vmem:[#allocation8 + $0x1a0] sm:$0xf]
        %v2096 = vld [vmem:[#allocation8 + $0x1a4] sm:$0xf]
        %v2097 = vld [vmem:[#allocation8 + $0x1a8] sm:$0xf]
        %v2098 = vld [vmem:[#allocation8 + $0x1ac] sm:$0xf]
        %v2099 = vld [vmem:[#allocation8 + $0x1b0] sm:$0xf]
        %v2100 = vld [vmem:[#allocation8 + $0x1b4] sm:$0xf]
        %v2101 = vld [vmem:[#allocation8 + $0x1b8] sm:$0xf]
        %v2102 = vld [vmem:[#allocation8 + $0x1bc] sm:$0xf]
        %v2119 = vunpack.c.l.b16 %v2071
        %v2120 = vunpack.c.l.b16 %v2072
        %v2121 = vunpack.c.l.b16 %v2073
        %v2122 = vunpack.c.l.b16 %v2074
        %v2123 = vunpack.c.l.b16 %v2075
        %v2124 = vunpack.c.l.b16 %v2076
        %v2125 = vunpack.c.l.b16 %v2077
        %v2126 = vunpack.c.l.b16 %v2078
        %v2127 = vunpack.c.l.b16 %v2079
        %v2128 = vunpack.c.l.b16 %v2080
        %v2129 = vunpack.c.l.b16 %v2081
        %v2130 = vunpack.c.l.b16 %v2082
        %v2131 = vunpack.c.l.b16 %v2083
        %v2132 = vunpack.c.l.b16 %v2084
        %v2133 = vunpack.c.l.b16 %v2085
        %v2134 = vunpack.c.l.b16 %v2086
        %v2135 = vpack.c.b16 %v2120, %v2119
        %v2136 = vpack.c.b16 %v2122, %v2121
        %v2137 = vpack.c.b16 %v2124, %v2123
        %v2138 = vpack.c.b16 %v2126, %v2125
        %v2139 = vpack.c.b16 %v2128, %v2127
        %v2140 = vpack.c.b16 %v2130, %v2129
        %v2141 = vpack.c.b16 %v2132, %v2131
        %v2142 = vpack.c.b16 %v2134, %v2133
        %v2167 = vunpack.c.l.b16 %v2087
        %v2168 = vunpack.c.l.b16 %v2088
        %v2169 = vunpack.c.l.b16 %v2089
        %v2170 = vunpack.c.l.b16 %v2090
        %v2171 = vunpack.c.l.b16 %v2091
        %v2172 = vunpack.c.l.b16 %v2092
        %v2173 = vunpack.c.l.b16 %v2093
        %v2174 = vunpack.c.l.b16 %v2094
        %v2175 = vunpack.c.l.b16 %v2095
        %v2176 = vunpack.c.l.b16 %v2096
        %v2177 = vunpack.c.l.b16 %v2097
        %v2178 = vunpack.c.l.b16 %v2098
        %v2179 = vunpack.c.l.b16 %v2099
        %v2180 = vunpack.c.l.b16 %v2100
        %v2181 = vunpack.c.l.b16 %v2101
        %v2182 = vunpack.c.l.b16 %v2102
        %v2183 = vpack.c.b16 %v2168, %v2167
        %v2184 = vpack.c.b16 %v2170, %v2169
        %v2185 = vpack.c.b16 %v2172, %v2171
        %v2186 = vpack.c.b16 %v2174, %v2173
        %v2187 = vpack.c.b16 %v2176, %v2175
        %v2188 = vpack.c.b16 %v2178, %v2177
        %v2189 = vpack.c.b16 %v2180, %v2179
        %v2190 = vpack.c.b16 %v2182, %v2181
        %2199 = vmatprep.subr.bf16.mxu0 0
        %2200 = vmatpush1.bf16.msra.mxu0 %v2190
        %2201 = vmatprep.subr.bf16.mxu0 0
        %2202 = vmatpush1.bf16.msra.mxu0 %v2189
        %2203 = vmatprep.subr.bf16.mxu0 0
        %2204 = vmatpush1.bf16.msra.mxu0 %v2188
        %2205 = vmatprep.subr.bf16.mxu0 0
        %2206 = vmatpush1.bf16.msra.mxu0 %v2187
        %2207 = vmatprep.subr.bf16.mxu0 0
        %2208 = vmatpush1.bf16.msra.mxu0 %v2186
        %2209 = vmatprep.subr.bf16.mxu0 0
        %2210 = vmatpush1.bf16.msra.mxu0 %v2185
        %2211 = vmatprep.subr.bf16.mxu0 0
        %2212 = vmatpush1.bf16.msra.mxu0 %v2184
        %2213 = vmatprep.subr.bf16.mxu0 0
        %2214 = vmatpush1.bf16.msra.mxu0 %v2183
        %2215 = vmatprep.subr.bf16.mxu0 0
        %2216 = vmatpush2.bf16.msra.mxu0 0
        %2217 = vmatprep.subr.bf16.mxu0 0
        %2218 = vmatpush2.bf16.msra.mxu0 0
        %2219 = vmatprep.subr.bf16.mxu0 0
        %2220 = vmatpush2.bf16.msra.mxu0 0
        %2221 = vmatprep.subr.bf16.mxu0 0
        %2222 = vmatpush2.bf16.msra.mxu0 0
        %2223 = vmatprep.subr.bf16.mxu0 0
        %2224 = vmatpush2.bf16.msra.mxu0 0
        %2225 = vmatprep.subr.bf16.mxu0 0
        %2226 = vmatpush2.bf16.msra.mxu0 0
        %2227 = vmatprep.subr.bf16.mxu0 0
        %2228 = vmatpush2.bf16.msra.mxu0 0
        %2229 = vmatprep.subr.bf16.mxu0 0
        %2230 = vmatpush2.bf16.msra.mxu0 0
        %2231 = vmatprep.mubr.bf16.mxu0 0
        %2232 = vmatmul.mubr.bf16.gmra.mxu0 %v2135
        %v2233 = vpop.f32.mrf.mxu0
        %v2234 = vadd.f32 0.0, %v2233
        %v2235 = vpop.f32.mrf.mxu0
        %v2236 = vpop.f32.mrf.mxu0
        %v2237 = vpop.f32.mrf.mxu0
        %2238 = vmatprep.mubr.bf16.mxu0 0
        %2239 = vmatmul.mubr.bf16.gmra.mxu0 %v2136
        %v2240 = vpop.f32.mrf.mxu0
        %v2241 = vadd.f32 0.0, %v2240
        %v2242 = vpop.f32.mrf.mxu0
        %v2243 = vpop.f32.mrf.mxu0
        %v2244 = vpop.f32.mrf.mxu0
        %2245 = vmatprep.mubr.bf16.mxu0 0
        %2246 = vmatmul.mubr.bf16.gmra.mxu0 %v2137
        %v2247 = vpop.f32.mrf.mxu0
        %v2248 = vadd.f32 0.0, %v2247
        %v2249 = vpop.f32.mrf.mxu0
        %v2250 = vpop.f32.mrf.mxu0
        %v2251 = vpop.f32.mrf.mxu0
        %2252 = vmatprep.mubr.bf16.mxu0 0
        %2253 = vmatmul.mubr.bf16.gmra.mxu0 %v2138
        %v2254 = vpop.f32.mrf.mxu0
        %v2255 = vadd.f32 0.0, %v2254
        %v2256 = vpop.f32.mrf.mxu0
        %v2257 = vpop.f32.mrf.mxu0
        %v2258 = vpop.f32.mrf.mxu0
        %2259 = vmatprep.mubr.bf16.mxu0 0
        %2260 = vmatmul.mubr.bf16.gmra.mxu0 %v2139
        %v2261 = vpop.f32.mrf.mxu0
        %v2262 = vadd.f32 0.0, %v2261
        %v2263 = vpop.f32.mrf.mxu0
        %v2264 = vpop.f32.mrf.mxu0
        %v2265 = vpop.f32.mrf.mxu0
        %2266 = vmatprep.mubr.bf16.mxu0 0
        %2267 = vmatmul.mubr.bf16.gmra.mxu0 %v2140
        %v2268 = vpop.f32.mrf.mxu0
        %v2269 = vadd.f32 0.0, %v2268
        %v2270 = vpop.f32.mrf.mxu0
        %v2271 = vpop.f32.mrf.mxu0
        %v2272 = vpop.f32.mrf.mxu0
        %2273 = vmatprep.mubr.bf16.mxu0 0
        %2274 = vmatmul.mubr.bf16.gmra.mxu0 %v2141
        %v2275 = vpop.f32.mrf.mxu0
        %v2276 = vadd.f32 0.0, %v2275
        %v2277 = vpop.f32.mrf.mxu0
        %v2278 = vpop.f32.mrf.mxu0
        %v2279 = vpop.f32.mrf.mxu0
        %2280 = vmatprep.mubr.bf16.mxu0 0
        %2281 = vmatmul.mubr.bf16.gmra.mxu0 %v2142
        %v2282 = vpop.f32.mrf.mxu0
        %v2283 = vadd.f32 0.0, %v2282
        %v2284 = vpop.f32.mrf.mxu0
        %v2285 = vpop.f32.mrf.mxu0
        %v2286 = vpop.f32.mrf.mxu0
        %2287 = vdwg.mxu0
        %v2288 = vadd.f32 %v2063, %v2234
        %v2289 = vadd.f32 %v2064, %v2241
        %v2290 = vadd.f32 %v2065, %v2248
        %v2291 = vadd.f32 %v2066, %v2255
        %v2292 = vadd.f32 %v2067, %v2262
        %v2293 = vadd.f32 %v2068, %v2269
        %v2294 = vadd.f32 %v2069, %v2276
        %v2295 = vadd.f32 %v2070, %v2283
        %v2296 = vld [vmem:[#allocation2 + $0x10] sm:$0xf]
        %v2297 = vld [vmem:[#allocation2 + $0x14] sm:$0xf]
        %v2298 = vld [vmem:[#allocation2 + $0x18] sm:$0xf]
        %v2299 = vld [vmem:[#allocation2 + $0x1c] sm:$0xf]
        %v2300 = vld [vmem:[#allocation2 + $0x20] sm:$0xf]
        %v2301 = vld [vmem:[#allocation2 + $0x24] sm:$0xf]
        %v2302 = vld [vmem:[#allocation2 + $0x28] sm:$0xf]
        %v2303 = vld [vmem:[#allocation2 + $0x2c] sm:$0xf]
        %v2304 = vld [vmem:[#allocation2 + $0x30] sm:$0xf]
        %v2305 = vld [vmem:[#allocation2 + $0x34] sm:$0xf]
        %v2306 = vld [vmem:[#allocation2 + $0x38] sm:$0xf]
        %v2307 = vld [vmem:[#allocation2 + $0x3c] sm:$0xf]
        %v2308 = vld [vmem:[#allocation2 + $0x40] sm:$0xf]
        %v2309 = vld [vmem:[#allocation2 + $0x44] sm:$0xf]
        %v2310 = vld [vmem:[#allocation2 + $0x48] sm:$0xf]
        %v2311 = vld [vmem:[#allocation2 + $0x4c] sm:$0xf]
        %v2312 = vld [vmem:[#allocation2 + $0x50] sm:$0x1]
        %v2313 = vld [vmem:[#allocation8 + $0x1c0] sm:$0xf]
        %v2314 = vld [vmem:[#allocation8 + $0x1c4] sm:$0xf]
        %v2315 = vld [vmem:[#allocation8 + $0x1c8] sm:$0xf]
        %v2316 = vld [vmem:[#allocation8 + $0x1cc] sm:$0xf]
        %v2317 = vld [vmem:[#allocation8 + $0x1d0] sm:$0xf]
        %v2318 = vld [vmem:[#allocation8 + $0x1d4] sm:$0xf]
        %v2319 = vld [vmem:[#allocation8 + $0x1d8] sm:$0xf]
        %v2320 = vld [vmem:[#allocation8 + $0x1dc] sm:$0xf]
        %v2321 = vld [vmem:[#allocation8 + $0x1e0] sm:$0xf]
        %v2322 = vld [vmem:[#allocation8 + $0x1e4] sm:$0xf]
        %v2323 = vld [vmem:[#allocation8 + $0x1e8] sm:$0xf]
        %v2324 = vld [vmem:[#allocation8 + $0x1ec] sm:$0xf]
        %v2325 = vld [vmem:[#allocation8 + $0x1f0] sm:$0xf]
        %v2326 = vld [vmem:[#allocation8 + $0x1f4] sm:$0xf]
        %v2327 = vld [vmem:[#allocation8 + $0x1f8] sm:$0xf]
        %v2328 = vld [vmem:[#allocation8 + $0x1fc] sm:$0xf]
        %v2346 = vunpack.c.l.b16 %v2296
        %v2347 = vunpack.c.l.b16 %v2297
        %v2348 = vunpack.c.l.b16 %v2298
        %v2349 = vunpack.c.l.b16 %v2299
        %v2350 = vunpack.c.l.b16 %v2300
        %v2351 = vunpack.c.l.b16 %v2301
        %v2352 = vunpack.c.l.b16 %v2302
        %v2353 = vunpack.c.l.b16 %v2303
        %v2354 = vunpack.c.l.b16 %v2304
        %v2355 = vunpack.c.l.b16 %v2305
        %v2356 = vunpack.c.l.b16 %v2306
        %v2357 = vunpack.c.l.b16 %v2307
        %v2358 = vunpack.c.l.b16 %v2308
        %v2359 = vunpack.c.l.b16 %v2309
        %v2360 = vunpack.c.l.b16 %v2310
        %v2361 = vunpack.c.l.b16 %v2311
        %v2362 = vunpack.c.l.b16 %v2312
        %v2363 = vpack.c.b16 %v2347, %v2346
        %v2364 = vpack.c.b16 %v2349, %v2348
        %v2365 = vpack.c.b16 %v2351, %v2350
        %v2366 = vpack.c.b16 %v2353, %v2352
        %v2367 = vpack.c.b16 %v2355, %v2354
        %v2368 = vpack.c.b16 %v2357, %v2356
        %v2369 = vpack.c.b16 %v2359, %v2358
        %v2370 = vpack.c.b16 %v2361, %v2360
        %v2371 = vpack.c.b16 %v2362, %v2362
        %v2373 = vshrl.u32 %v2363, 16
        %v2375 = vshll.u32 %v2363, 16
        %v2377 = vrot.slane %v2375, 1
        %v2378 = vor.u32 %v2373, %v2377
        %v2380 = vshll.u32 %v2364, 16
        %v2382 = vrot.slane %v2380, 1
        %v2383 = vsel %vm809, %v2378, %v2382
        %v2384 = vshrl.u32 %v2364, 16
        %v2386 = vor.u32 %v2384, %v2382
        %v2388 = vshll.u32 %v2365, 16
        %v2390 = vrot.slane %v2388, 1
        %v2391 = vsel %vm809, %v2386, %v2390
        %v2392 = vshrl.u32 %v2365, 16
        %v2394 = vor.u32 %v2392, %v2390
        %v2396 = vshll.u32 %v2366, 16
        %v2398 = vrot.slane %v2396, 1
        %v2399 = vsel %vm809, %v2394, %v2398
        %v2400 = vshrl.u32 %v2366, 16
        %v2402 = vor.u32 %v2400, %v2398
        %v2404 = vshll.u32 %v2367, 16
        %v2406 = vrot.slane %v2404, 1
        %v2407 = vsel %vm809, %v2402, %v2406
        %v2408 = vshrl.u32 %v2367, 16
        %v2410 = vor.u32 %v2408, %v2406
        %v2412 = vshll.u32 %v2368, 16
        %v2414 = vrot.slane %v2412, 1
        %v2415 = vsel %vm809, %v2410, %v2414
        %v2416 = vshrl.u32 %v2368, 16
        %v2418 = vor.u32 %v2416, %v2414
        %v2420 = vshll.u32 %v2369, 16
        %v2422 = vrot.slane %v2420, 1
        %v2423 = vsel %vm809, %v2418, %v2422
        %v2424 = vshrl.u32 %v2369, 16
        %v2426 = vor.u32 %v2424, %v2422
        %v2428 = vshll.u32 %v2370, 16
        %v2430 = vrot.slane %v2428, 1
        %v2431 = vsel %vm809, %v2426, %v2430
        %v2432 = vshrl.u32 %v2370, 16
        %v2434 = vor.u32 %v2432, %v2430
        %v2436 = vshll.u32 %v2371, 16
        %v2438 = vrot.slane %v2436, 1
        %v2439 = vsel %vm809, %v2434, %v2438
        %v2464 = vunpack.c.l.b16 %v2313
        %v2465 = vunpack.c.l.b16 %v2314
        %v2466 = vunpack.c.l.b16 %v2315
        %v2467 = vunpack.c.l.b16 %v2316
        %v2468 = vunpack.c.l.b16 %v2317
        %v2469 = vunpack.c.l.b16 %v2318
        %v2470 = vunpack.c.l.b16 %v2319
        %v2471 = vunpack.c.l.b16 %v2320
        %v2472 = vunpack.c.l.b16 %v2321
        %v2473 = vunpack.c.l.b16 %v2322
        %v2474 = vunpack.c.l.b16 %v2323
        %v2475 = vunpack.c.l.b16 %v2324
        %v2476 = vunpack.c.l.b16 %v2325
        %v2477 = vunpack.c.l.b16 %v2326
        %v2478 = vunpack.c.l.b16 %v2327
        %v2479 = vunpack.c.l.b16 %v2328
        %v2480 = vpack.c.b16 %v2465, %v2464
        %v2481 = vpack.c.b16 %v2467, %v2466
        %v2482 = vpack.c.b16 %v2469, %v2468
        %v2483 = vpack.c.b16 %v2471, %v2470
        %v2484 = vpack.c.b16 %v2473, %v2472
        %v2485 = vpack.c.b16 %v2475, %v2474
        %v2486 = vpack.c.b16 %v2477, %v2476
        %v2487 = vpack.c.b16 %v2479, %v2478
        %2496 = vmatprep.subr.bf16.mxu0 0
        %2497 = vmatpush1.bf16.msra.mxu0 %v2487
        %2498 = vmatprep.subr.bf16.mxu0 0
        %2499 = vmatpush1.bf16.msra.mxu0 %v2486
        %2500 = vmatprep.subr.bf16.mxu0 0
        %2501 = vmatpush1.bf16.msra.mxu0 %v2485
        %2502 = vmatprep.subr.bf16.mxu0 0
        %2503 = vmatpush1.bf16.msra.mxu0 %v2484
        %2504 = vmatprep.subr.bf16.mxu0 0
        %2505 = vmatpush1.bf16.msra.mxu0 %v2483
        %2506 = vmatprep.subr.bf16.mxu0 0
        %2507 = vmatpush1.bf16.msra.mxu0 %v2482
        %2508 = vmatprep.subr.bf16.mxu0 0
        %2509 = vmatpush1.bf16.msra.mxu0 %v2481
        %2510 = vmatprep.subr.bf16.mxu0 0
        %2511 = vmatpush1.bf16.msra.mxu0 %v2480
        %2512 = vmatprep.subr.bf16.mxu0 0
        %2513 = vmatpush2.bf16.msra.mxu0 0
        %2514 = vmatprep.subr.bf16.mxu0 0
        %2515 = vmatpush2.bf16.msra.mxu0 0
        %2516 = vmatprep.subr.bf16.mxu0 0
        %2517 = vmatpush2.bf16.msra.mxu0 0
        %2518 = vmatprep.subr.bf16.mxu0 0
        %2519 = vmatpush2.bf16.msra.mxu0 0
        %2520 = vmatprep.subr.bf16.mxu0 0
        %2521 = vmatpush2.bf16.msra.mxu0 0
        %2522 = vmatprep.subr.bf16.mxu0 0
        %2523 = vmatpush2.bf16.msra.mxu0 0
        %2524 = vmatprep.subr.bf16.mxu0 0
        %2525 = vmatpush2.bf16.msra.mxu0 0
        %2526 = vmatprep.subr.bf16.mxu0 0
        %2527 = vmatpush2.bf16.msra.mxu0 0
        %2528 = vmatprep.mubr.bf16.mxu0 0
        %2529 = vmatmul.mubr.bf16.gmra.mxu0 %v2383
        %v2530 = vpop.f32.mrf.mxu0
        %v2531 = vadd.f32 0.0, %v2530
        %v2532 = vpop.f32.mrf.mxu0
        %v2533 = vpop.f32.mrf.mxu0
        %v2534 = vpop.f32.mrf.mxu0
        %2535 = vmatprep.mubr.bf16.mxu0 0
        %2536 = vmatmul.mubr.bf16.gmra.mxu0 %v2391
        %v2537 = vpop.f32.mrf.mxu0
        %v2538 = vadd.f32 0.0, %v2537
        %v2539 = vpop.f32.mrf.mxu0
        %v2540 = vpop.f32.mrf.mxu0
        %v2541 = vpop.f32.mrf.mxu0
        %2542 = vmatprep.mubr.bf16.mxu0 0
        %2543 = vmatmul.mubr.bf16.gmra.mxu0 %v2399
        %v2544 = vpop.f32.mrf.mxu0
        %v2545 = vadd.f32 0.0, %v2544
        %v2546 = vpop.f32.mrf.mxu0
        %v2547 = vpop.f32.mrf.mxu0
        %v2548 = vpop.f32.mrf.mxu0
        %2549 = vmatprep.mubr.bf16.mxu0 0
        %2550 = vmatmul.mubr.bf16.gmra.mxu0 %v2407
        %v2551 = vpop.f32.mrf.mxu0
        %v2552 = vadd.f32 0.0, %v2551
        %v2553 = vpop.f32.mrf.mxu0
        %v2554 = vpop.f32.mrf.mxu0
        %v2555 = vpop.f32.mrf.mxu0
        %2556 = vmatprep.mubr.bf16.mxu0 0
        %2557 = vmatmul.mubr.bf16.gmra.mxu0 %v2415
        %v2558 = vpop.f32.mrf.mxu0
        %v2559 = vadd.f32 0.0, %v2558
        %v2560 = vpop.f32.mrf.mxu0
        %v2561 = vpop.f32.mrf.mxu0
        %v2562 = vpop.f32.mrf.mxu0
        %2563 = vmatprep.mubr.bf16.mxu0 0
        %2564 = vmatmul.mubr.bf16.gmra.mxu0 %v2423
        %v2565 = vpop.f32.mrf.mxu0
        %v2566 = vadd.f32 0.0, %v2565
        %v2567 = vpop.f32.mrf.mxu0
        %v2568 = vpop.f32.mrf.mxu0
        %v2569 = vpop.f32.mrf.mxu0
        %2570 = vmatprep.mubr.bf16.mxu0 0
        %2571 = vmatmul.mubr.bf16.gmra.mxu0 %v2431
        %v2572 = vpop.f32.mrf.mxu0
        %v2573 = vadd.f32 0.0, %v2572
        %v2574 = vpop.f32.mrf.mxu0
        %v2575 = vpop.f32.mrf.mxu0
        %v2576 = vpop.f32.mrf.mxu0
        %2577 = vmatprep.mubr.bf16.mxu0 0
        %2578 = vmatmul.mubr.bf16.gmra.mxu0 %v2439
        %v2579 = vpop.f32.mrf.mxu0
        %v2580 = vadd.f32 0.0, %v2579
        %v2581 = vpop.f32.mrf.mxu0
        %v2582 = vpop.f32.mrf.mxu0
        %v2583 = vpop.f32.mrf.mxu0
        %2584 = vdwg.mxu0
        %v2585 = vadd.f32 %v2288, %v2531
        %v2586 = vadd.f32 %v2289, %v2538
        %v2587 = vadd.f32 %v2290, %v2545
        %v2588 = vadd.f32 %v2291, %v2552
        %v2589 = vadd.f32 %v2292, %v2559
        %v2590 = vadd.f32 %v2293, %v2566
        %v2591 = vadd.f32 %v2294, %v2573
        %v2592 = vadd.f32 %v2295, %v2580
        %v2593 = vld [vmem:[#allocation2 + $0x10] sm:$0xe]
        %v2594 = vld [vmem:[#allocation8 + $0x200] sm:$0xf]
        %v2595 = vld [vmem:[#allocation8 + $0x204] sm:$0xf]
        %v2596 = vld [vmem:[#allocation8 + $0x208] sm:$0xf]
        %v2597 = vld [vmem:[#allocation8 + $0x20c] sm:$0xf]
        %v2598 = vld [vmem:[#allocation8 + $0x210] sm:$0xf]
        %v2599 = vld [vmem:[#allocation8 + $0x214] sm:$0xf]
        %v2600 = vld [vmem:[#allocation8 + $0x218] sm:$0xf]
        %v2601 = vld [vmem:[#allocation8 + $0x21c] sm:$0xf]
        %v2602 = vld [vmem:[#allocation8 + $0x220] sm:$0xf]
        %v2603 = vld [vmem:[#allocation8 + $0x224] sm:$0xf]
        %v2604 = vld [vmem:[#allocation8 + $0x228] sm:$0xf]
        %v2605 = vld [vmem:[#allocation8 + $0x22c] sm:$0xf]
        %v2606 = vld [vmem:[#allocation8 + $0x230] sm:$0xf]
        %v2607 = vld [vmem:[#allocation8 + $0x234] sm:$0xf]
        %v2608 = vld [vmem:[#allocation8 + $0x238] sm:$0xf]
        %v2609 = vld [vmem:[#allocation8 + $0x23c] sm:$0xf]
        %v2611 = vunpack.c.l.b16 %v2593
        %v2612 = vpack.c.b16 %v2347, %v2611
        %v2613 = vrot.slane %v2612, 1
        %v2614 = vrot.slane %v2364, 1
        %v2615 = vsel %vm1188, %v2613, %v2614
        %v2616 = vrot.slane %v2365, 1
        %v2617 = vsel %vm1188, %v2614, %v2616
        %v2618 = vrot.slane %v2366, 1
        %v2619 = vsel %vm1188, %v2616, %v2618
        %v2620 = vrot.slane %v2367, 1
        %v2621 = vsel %vm1188, %v2618, %v2620
        %v2622 = vrot.slane %v2368, 1
        %v2623 = vsel %vm1188, %v2620, %v2622
        %v2624 = vrot.slane %v2369, 1
        %v2625 = vsel %vm1188, %v2622, %v2624
        %v2626 = vrot.slane %v2370, 1
        %v2627 = vsel %vm1188, %v2624, %v2626
        %v2628 = vrot.slane %v2371, 1
        %v2629 = vsel %vm1188, %v2626, %v2628
        %v2654 = vunpack.c.l.b16 %v2594
        %v2655 = vunpack.c.l.b16 %v2595
        %v2656 = vunpack.c.l.b16 %v2596
        %v2657 = vunpack.c.l.b16 %v2597
        %v2658 = vunpack.c.l.b16 %v2598
        %v2659 = vunpack.c.l.b16 %v2599
        %v2660 = vunpack.c.l.b16 %v2600
        %v2661 = vunpack.c.l.b16 %v2601
        %v2662 = vunpack.c.l.b16 %v2602
        %v2663 = vunpack.c.l.b16 %v2603
        %v2664 = vunpack.c.l.b16 %v2604
        %v2665 = vunpack.c.l.b16 %v2605
        %v2666 = vunpack.c.l.b16 %v2606
        %v2667 = vunpack.c.l.b16 %v2607
        %v2668 = vunpack.c.l.b16 %v2608
        %v2669 = vunpack.c.l.b16 %v2609
        %v2670 = vpack.c.b16 %v2655, %v2654
        %v2671 = vpack.c.b16 %v2657, %v2656
        %v2672 = vpack.c.b16 %v2659, %v2658
        %v2673 = vpack.c.b16 %v2661, %v2660
        %v2674 = vpack.c.b16 %v2663, %v2662
        %v2675 = vpack.c.b16 %v2665, %v2664
        %v2676 = vpack.c.b16 %v2667, %v2666
        %v2677 = vpack.c.b16 %v2669, %v2668
        %2686 = vmatprep.subr.bf16.mxu0 0
        %2687 = vmatpush1.bf16.msra.mxu0 %v2677
        %2688 = vmatprep.subr.bf16.mxu0 0
        %2689 = vmatpush1.bf16.msra.mxu0 %v2676
        %2690 = vmatprep.subr.bf16.mxu0 0
        %2691 = vmatpush1.bf16.msra.mxu0 %v2675
        %2692 = vmatprep.subr.bf16.mxu0 0
        %2693 = vmatpush1.bf16.msra.mxu0 %v2674
        %2694 = vmatprep.subr.bf16.mxu0 0
        %2695 = vmatpush1.bf16.msra.mxu0 %v2673
        %2696 = vmatprep.subr.bf16.mxu0 0
        %2697 = vmatpush1.bf16.msra.mxu0 %v2672
        %2698 = vmatprep.subr.bf16.mxu0 0
        %2699 = vmatpush1.bf16.msra.mxu0 %v2671
        %2700 = vmatprep.subr.bf16.mxu0 0
        %2701 = vmatpush1.bf16.msra.mxu0 %v2670
        %2702 = vmatprep.subr.bf16.mxu0 0
        %2703 = vmatpush2.bf16.msra.mxu0 0
        %2704 = vmatprep.subr.bf16.mxu0 0
        %2705 = vmatpush2.bf16.msra.mxu0 0
        %2706 = vmatprep.subr.bf16.mxu0 0
        %2707 = vmatpush2.bf16.msra.mxu0 0
        %2708 = vmatprep.subr.bf16.mxu0 0
        %2709 = vmatpush2.bf16.msra.mxu0 0
        %2710 = vmatprep.subr.bf16.mxu0 0
        %2711 = vmatpush2.bf16.msra.mxu0 0
        %2712 = vmatprep.subr.bf16.mxu0 0
        %2713 = vmatpush2.bf16.msra.mxu0 0
        %2714 = vmatprep.subr.bf16.mxu0 0
        %2715 = vmatpush2.bf16.msra.mxu0 0
        %2716 = vmatprep.subr.bf16.mxu0 0
        %2717 = vmatpush2.bf16.msra.mxu0 0
        %2718 = vmatprep.mubr.bf16.mxu0 0
        %2719 = vmatmul.mubr.bf16.gmra.mxu0 %v2615
        %v2720 = vpop.f32.mrf.mxu0
        %v2721 = vadd.f32 0.0, %v2720
        %v2722 = vpop.f32.mrf.mxu0
        %v2723 = vpop.f32.mrf.mxu0
        %v2724 = vpop.f32.mrf.mxu0
        %2725 = vmatprep.mubr.bf16.mxu0 0
        %2726 = vmatmul.mubr.bf16.gmra.mxu0 %v2617
        %v2727 = vpop.f32.mrf.mxu0
        %v2728 = vadd.f32 0.0, %v2727
        %v2729 = vpop.f32.mrf.mxu0
        %v2730 = vpop.f32.mrf.mxu0
        %v2731 = vpop.f32.mrf.mxu0
        %2732 = vmatprep.mubr.bf16.mxu0 0
        %2733 = vmatmul.mubr.bf16.gmra.mxu0 %v2619
        %v2734 = vpop.f32.mrf.mxu0
        %v2735 = vadd.f32 0.0, %v2734
        %v2736 = vpop.f32.mrf.mxu0
        %v2737 = vpop.f32.mrf.mxu0
        %v2738 = vpop.f32.mrf.mxu0
        %2739 = vmatprep.mubr.bf16.mxu0 0
        %2740 = vmatmul.mubr.bf16.gmra.mxu0 %v2621
        %v2741 = vpop.f32.mrf.mxu0
        %v2742 = vadd.f32 0.0, %v2741
        %v2743 = vpop.f32.mrf.mxu0
        %v2744 = vpop.f32.mrf.mxu0
        %v2745 = vpop.f32.mrf.mxu0
        %2746 = vmatprep.mubr.bf16.mxu0 0
        %2747 = vmatmul.mubr.bf16.gmra.mxu0 %v2623
        %v2748 = vpop.f32.mrf.mxu0
        %v2749 = vadd.f32 0.0, %v2748
        %v2750 = vpop.f32.mrf.mxu0
        %v2751 = vpop.f32.mrf.mxu0
        %v2752 = vpop.f32.mrf.mxu0
        %2753 = vmatprep.mubr.bf16.mxu0 0
        %2754 = vmatmul.mubr.bf16.gmra.mxu0 %v2625
        %v2755 = vpop.f32.mrf.mxu0
        %v2756 = vadd.f32 0.0, %v2755
        %v2757 = vpop.f32.mrf.mxu0
        %v2758 = vpop.f32.mrf.mxu0
        %v2759 = vpop.f32.mrf.mxu0
        %2760 = vmatprep.mubr.bf16.mxu0 0
        %2761 = vmatmul.mubr.bf16.gmra.mxu0 %v2627
        %v2762 = vpop.f32.mrf.mxu0
        %v2763 = vadd.f32 0.0, %v2762
        %v2764 = vpop.f32.mrf.mxu0
        %v2765 = vpop.f32.mrf.mxu0
        %v2766 = vpop.f32.mrf.mxu0
        %2767 = vmatprep.mubr.bf16.mxu0 0
        %2768 = vmatmul.mubr.bf16.gmra.mxu0 %v2629
        %v2769 = vpop.f32.mrf.mxu0
        %v2770 = vadd.f32 0.0, %v2769
        %v2771 = vpop.f32.mrf.mxu0
        %v2772 = vpop.f32.mrf.mxu0
        %v2773 = vpop.f32.mrf.mxu0
        %2774 = vdwg.mxu0
        %v2775 = vadd.f32 %v2585, %v2721
        %v2776 = vadd.f32 %v2586, %v2728
        %v2777 = vadd.f32 %v2587, %v2735
        %v2778 = vadd.f32 %v2588, %v2742
        %v2779 = vadd.f32 %v2589, %v2749
        %v2780 = vadd.f32 %v2590, %v2756
        %v2781 = vadd.f32 %v2591, %v2763
        %v2782 = vadd.f32 %v2592, %v2770
        %v2783 = vld [vmem:[%s4] sm:$0x1]
        %v2785 = vlaneseq
        %v2786 = vshrl.u32 %v2785, 7
        %v2787 = vsub.s32 0, %v2786
        %v2788 = vrot.slane %v2783, %v2787
        %v2790 = vadd.f32 %v2775, %v2788
        %v2791 = vadd.f32 %v2776, %v2788
        %v2792 = vadd.f32 %v2777, %v2788
        %v2793 = vadd.f32 %v2778, %v2788
        %v2794 = vadd.f32 %v2779, %v2788
        %v2795 = vadd.f32 %v2780, %v2788
        %v2796 = vadd.f32 %v2781, %v2788
        %v2797 = vadd.f32 %v2782, %v2788
        %v2798 = vmax.f32 %v2790, 0.0
        %v2799 = vmax.f32 %v2791, 0.0
        %v2800 = vmax.f32 %v2792, 0.0
        %v2801 = vmax.f32 %v2793, 0.0
        %v2802 = vmax.f32 %v2794, 0.0
        %v2803 = vmax.f32 %v2795, 0.0
        %v2804 = vmax.f32 %v2796, 0.0
        %v2805 = vmax.f32 %v2797, 0.0
        %v2806 = vpack.c.bf16 %v2798, %v2798
        %v2807 = vpack.c.bf16 %v2799, %v2799
        %v2808 = vpack.c.bf16 %v2800, %v2800
        %v2809 = vpack.c.bf16 %v2801, %v2801
        %v2810 = vpack.c.bf16 %v2802, %v2802
        %v2811 = vpack.c.bf16 %v2803, %v2803
        %v2812 = vpack.c.bf16 %v2804, %v2804
        %v2813 = vpack.c.bf16 %v2805, %v2805
        %2814 = vst [vmem:[%s271] sm:$0xf] %v2806
        %2815 = vst [vmem:[%s271 + $0x4] sm:$0xf] %v2807
        %2816 = vst [vmem:[%s271 + $0x8] sm:$0xf] %v2808
        %2817 = vst [vmem:[%s271 + $0xc] sm:$0xf] %v2809
        %2818 = vst [vmem:[%s271 + $0x10] sm:$0xf] %v2810
        %2819 = vst [vmem:[%s271 + $0x14] sm:$0xf] %v2811
        %2820 = vst [vmem:[%s271 + $0x18] sm:$0xf] %v2812
        %2821 = vst [vmem:[%s271 + $0x1c] sm:$0xf] %v2813
        %s2822 = sand.u32 %s141, 1
        %s2823 = scalar_lea.sflag [#allocation5], %s2822
        %s2824 = sand.u32 %s141, 1
        %s2825 = smul.addr %s2824, 32
        %s2826 = scalar_lea.vmem [#allocation9], %s2825
        // Predicated region
        $region53: #{tpu_custom_call.1} parent=39 // pred_check
          %p2827 = pneg %p151
        $region54: #{tpu_custom_call.1} parent=39 // pred_check_branch
          %2829 = sbr.rel (%p2827) target = $region56
        $region55: #{tpu_custom_call.1} parent=39 // pred_region
          %s2831 = ssub.s32 512, 512
          %2832 = vsyncadd %s2823, %s2831
          %s2833 = smul.addr %s23, 8
          %s2834 = smul.addr %s2833, 64
          %s2835 = scalar_lea.hbm %s5, %s2834
          %s2836 = sshll.u32 %s2826, 4
          %s2837 = int_to_ptr.vmem [resolvable:$true] %s2836
          %2842 = dma.vmem_to_hbm [thread:$0]  %s2837, 512, %s2835, %s2823, 64, 64, 4
        $region56: #{tpu_custom_call.1} parent=39 // pred_fallthru
          _
      $region40: #{tpu_custom_call.1} parent=5 // pred_fallthru
        _
      %p2843 = scmp.le.s32.totalorder 2, %s18
      // Predicated region
      $region57: #{tpu_custom_call.1} parent=5 // pred_check
        %p2844 = pneg %p2843
      $region58: #{tpu_custom_call.1} parent=5 // pred_check_branch
        %2846 = sbr.rel (%p2844) target = $region60
      $region59: #{tpu_custom_call.1} parent=5 // pred_region
        %s2847 = ssub.s32 %s18, 2
        // Predicated region
        $region61: #{tpu_custom_call.1} parent=59 // pred_check
          %p2848 = pneg %p157
        $region62: #{tpu_custom_call.1} parent=59 // pred_check_branch
          %2850 = sbr.rel (%p2848) target = $region64
        $region63: #{tpu_custom_call.1} parent=59 // pred_region
          %s2851 = sand.u32 %s142, 1
          %s2852 = scalar_lea.sflag [#allocation5], %s2851
          %s2853 = sand.u32 %s142, 1
          %s2854 = smul.addr %s2853, 32
          %s2855 = scalar_lea.vmem [#allocation9], %s2854
          %2856 = dma.done %s2852, 512
        $region64: #{tpu_custom_call.1} parent=59 // pred_fallthru
          _
      $region60: #{tpu_custom_call.1} parent=5 // pred_fallthru
        _
    $region6: #{tpu_custom_call.1} parent=1 // loop_footer
      %s22 = sadd.s32 1, %s18
    $region7: #{tpu_custom_call.1} parent=1 // loop_footer_branch
      %17 = sbr.rel target = $region3
    $region8: #{tpu_custom_call.1} parent=1 // loop_exit
      _
    %2857 = vsyncpa [#allocation4], 1
    %s2858 = scalar_lea.sflag [#allocation4], 1
    %2859 = vsyncpa %s2858, 1
    %2860 = vsyncpa [#allocation7], 1
    %2861 = vsyncpa [#allocation5], 1
    %s2862 = scalar_lea.sflag [#allocation5], 1
    %2863 = vsyncpa %s2862, 1

</llo_original>
